<compile_context>
chip_gen: v7x
topology: tpu7x:2x2x1
jax: 0.10.0
libtpu: 0.0.40
codegen_flags: <defaults>
</compile_context>

<pallas_src>
import jax
import jax.numpy as jnp
from jax.experimental import pallas as pl
from jax.experimental.pallas import tpu as pltpu


def _embedding_kernel(x_ref, add_ref, cls_ref, o_ref):
    # x_ref:   (bb, T, te)    batch/E block of x0
    # add_ref: (T, te)        positions[1:] + repeated segment embedding
    # cls_ref: (1, te)        cls_token + positions[0]
    # o_ref:   (bb, T+1, te)  output block
    bb, T, te = x_ref.shape

    # Output token 0: the cls row, broadcast over the batch block.
    o_ref[:, 0:1, :] = jnp.broadcast_to(cls_ref[...][None, :, :], (bb, 1, te))

    # Output tokens 1..T: direct store at token offset 1 (no staging buffer,
    # no in-body DMA).  The kernel is HBM-bound, so the sublane-shifted
    # (masked) stores this lowers to are free filler under the DMA time.
    o_ref[:, 1:1 + T, :] = x_ref[...] + add_ref[...][None, :, :]


def embedding_forward(x0, cls_token, positions, segment_embedding):
    """Pallas-backed equivalent of EmbeddingLayer.forward.

    x0:                 (b, T, E)  with T = n_seg * seg_len (module: 10 * 81)
    cls_token:          (1, 1, E)
    positions:          (T + 1, E)
    segment_embedding:  (n_seg, E)
    returns:            (b, T + 1, E)
    """
    b, T, E = x0.shape
    n_seg = segment_embedding.shape[0]
    seg_len = T // n_seg
    assert T == n_seg * seg_len, "total tokens must be n_segments * segment_length"
    assert positions.shape == (T + 1, E)
    assert cls_token.shape[-1] == E and segment_embedding.shape[-1] == E

    itemsize = jnp.dtype(x0.dtype).itemsize

    # Parameter-sized pre-combine (tiny vs. activation traffic).
    add_body = (positions[1:]
                + jnp.repeat(segment_embedding, seg_len, axis=0)).astype(x0.dtype)  # (T, E)
    cls_row = (cls_token.reshape(1, E) + positions[0:1]).astype(x0.dtype)            # (1, E)

    # ---- Per-generation VMEM budget (v7x has only 64 MiB physical) --------
    try:
        vmem_cap = pltpu.get_tpu_info().vmem_capacity_bytes
    except Exception:
        vmem_cap = 64 << 20  # conservative (v7x-sized) default
    if vmem_cap >= (100 << 20):       # v5e / v6e: 128 MiB physical
        budget = 48 << 20
        vmem_limit = 64 << 20
    else:                              # v7x: 64 MiB physical
        budget = 28 << 20
        vmem_limit = 40 << 20

    # ---- Batch block: biggest that fits the budget, keeping >= 2 grid steps
    per_b = 2 * (T + (T + 1)) * E * itemsize     # double-buffered in + out per batch elem
    fixed = 2 * (T * E + E) * itemsize           # add tables (also double-buffered)
    bb = 1
    for cand in (8, 4, 2):
        if b % cand == 0 and b // cand >= 2 and cand * per_b + fixed <= budget:
            bb = cand
            break
    nb = b // bb

    # ---- E tiling: when the batch grid is short, tile E (lane-aligned,
    # shift-agnostic) so prefetch/writeback overlap and megacore both engage.
    if nb < 4 and E % 128 == 0 and E >= 256:
        te = 128
    else:
        te = E
    ne = E // te

    grid = (nb, ne)

    flops = 2 * b * (T + 1) * E
    bytes_accessed = itemsize * (b * T * E + (T + 1) * E + n_seg * E + b * (T + 1) * E)

    return pl.pallas_call(
        _embedding_kernel,
        out_shape=jax.ShapeDtypeStruct((b, T + 1, E), x0.dtype),
        grid_spec=pltpu.PrefetchScalarGridSpec(
            num_scalar_prefetch=0,
            grid=grid,
            in_specs=[
                pl.BlockSpec((bb, T, te), lambda i, j: (i, 0, j)),   # x0 block
                pl.BlockSpec((T, te), lambda i, j: (0, j)),          # add_body
                pl.BlockSpec((1, te), lambda i, j: (0, j)),          # cls_row
            ],
            out_specs=pl.BlockSpec((bb, T + 1, te), lambda i, j: (i, 0, j)),
        ),
        compiler_params=pltpu.CompilerParams(
            dimension_semantics=("parallel", "parallel"),
            vmem_limit_bytes=vmem_limit,
        ),
        cost_estimate=pl.CostEstimate(
            flops=flops, transcendentals=0, bytes_accessed=bytes_accessed),
    )(x0, add_body, cls_row)


if __name__ == "__main__":
    key = jax.random.PRNGKey(0)
    k_x, k_c, k_p, k_s = jax.random.split(key, 4)

    # Small shapes consistent with the module: emb_size=256, total_tokens=10*81
    b = 2
    emb_size = 256
    n_seg, seg_len = 10, 81
    total_tokens = n_seg * seg_len  # 810

    x0 = jax.random.normal(k_x, (b, total_tokens, emb_size), dtype=jnp.float32)
    cls_token = jax.random.normal(k_c, (1, 1, emb_size), dtype=jnp.float32)
    positions = jax.random.normal(k_p, (total_tokens + 1, emb_size), dtype=jnp.float32)
    segment_embedding = jax.random.normal(k_s, (n_seg, emb_size), dtype=jnp.float32)

    fwd = jax.jit(embedding_forward)
    out = jax.block_until_ready(fwd(x0, cls_token, positions, segment_embedding))

    # Plain-JAX reference (same math, no Pallas).
    ref = jnp.concatenate([jnp.broadcast_to(cls_token, (b, 1, emb_size)), x0], axis=1)
    ref = ref.at[:, 1:, :].add(jnp.repeat(segment_embedding, seg_len, axis=0)[None])
    ref = ref + positions[None]

    assert out.shape == (b, total_tokens + 1, emb_size)
    assert jnp.allclose(out, ref, atol=1e-5, rtol=1e-5)
    print("KERNEL_OK")
</pallas_src>

<mosaic_0001>
module attributes {stable_mosaic.version = 11 : i64} {
  func.func @_embedding_kernel(%arg0: i32, %arg1: i32, %arg2: memref<1x810x128xf32, #tpu.memory_space<vmem>>, %arg3: memref<810x128xf32, #tpu.memory_space<vmem>>, %arg4: memref<1x128xf32, #tpu.memory_space<vmem>>, %arg5: memref<1x811x128xf32, #tpu.memory_space<vmem>>) attributes {dimension_semantics = [#tpu.dimension_semantics<parallel>, #tpu.dimension_semantics<parallel>], iteration_bounds = array<i64: 2, 2>, scalar_prefetch = 0 : i64, scratch_operands = 0 : i64, tpu.core_type = #tpu.core_type<tc>, window_params = [{transform_indices = @transform_0, window_bounds = array<i64: 1, 810, 128>}, {transform_indices = @transform_1, window_bounds = array<i64: 810, 128>}, {transform_indices = @transform_2, window_bounds = array<i64: 1, 128>}, {transform_indices = @transform_3, window_bounds = array<i64: 1, 811, 128>}]} {
    %c0 = arith.constant 0 : index
    %c0_0 = arith.constant 0 : index
    %0 = vector.load %arg4[%c0, %c0_0] : memref<1x128xf32, #tpu.memory_space<vmem>>, vector<1x128xf32>
    %1 = vector.shape_cast %0 : vector<1x128xf32> to vector<1x1x128xf32>
    %c0_1 = arith.constant 0 : index
    %c0_2 = arith.constant 0 : index
    %c0_3 = arith.constant 0 : index
    %2 = vector.load %arg5[%c0_1, %c0_2, %c0_3] : memref<1x811x128xf32, #tpu.memory_space<vmem>>, vector<1x1x128xf32>
    tpu.vector_store %arg5[%c0_1, %c0_2, %c0_3], %1 {strides = array<i32>} : memref<1x811x128xf32, #tpu.memory_space<vmem>>, vector<1x1x128xf32>,
    %c0_4 = arith.constant 0 : index
    %c0_5 = arith.constant 0 : index
    %c0_6 = arith.constant 0 : index
    %3 = vector.load %arg2[%c0_4, %c0_5, %c0_6] : memref<1x810x128xf32, #tpu.memory_space<vmem>>, vector<1x810x128xf32>
    %c0_7 = arith.constant 0 : index
    %c0_8 = arith.constant 0 : index
    %4 = vector.load %arg3[%c0_7, %c0_8] : memref<810x128xf32, #tpu.memory_space<vmem>>, vector<810x128xf32>
    %5 = vector.shape_cast %4 : vector<810x128xf32> to vector<1x810x128xf32>
    %6 = arith.addf %3, %5 : vector<1x810x128xf32>
    %c0_9 = arith.constant 0 : index
    %c1 = arith.constant 1 : index
    %c0_10 = arith.constant 0 : index
    %7 = vector.load %arg5[%c0_9, %c1, %c0_10] : memref<1x811x128xf32, #tpu.memory_space<vmem>>, vector<1x810x128xf32>
    tpu.vector_store %arg5[%c0_9, %c1, %c0_10], %6 {strides = array<i32>} : memref<1x811x128xf32, #tpu.memory_space<vmem>>, vector<1x810x128xf32>,
    return
  }
  func.func @transform_0(%arg0: i32, %arg1: i32) -> (i32, i32, i32) {
    %c0_i32 = arith.constant 0 : i32
    %c0_i32_0 = arith.constant 0 : i32
    return %arg0, %c0_i32, %arg1 : i32, i32, i32
  }
  func.func @transform_1(%arg0: i32, %arg1: i32) -> (i32, i32) {
    %c0_i32 = arith.constant 0 : i32
    %c0_i32_0 = arith.constant 0 : i32
    return %c0_i32, %arg1 : i32, i32
  }
  func.func @transform_2(%arg0: i32, %arg1: i32) -> (i32, i32) {
    %c0_i32 = arith.constant 0 : i32
    %c0_i32_0 = arith.constant 0 : i32
    return %c0_i32, %arg1 : i32, i32
  }
  func.func @transform_3(%arg0: i32, %arg1: i32) -> (i32, i32, i32) {
    %c0_i32 = arith.constant 0 : i32
    %c0_i32_0 = arith.constant 0 : i32
    return %arg0, %c0_i32, %arg1 : i32, i32, i32
  }
}

</mosaic_0001>

<llo_original>
// kernel: embedding_forward.1
$region0: #{embedding_forward.1}
  #allocation0 [shape = 'u32[]', space=smem, size = 0x4, offset = 0x4, fixed_abs, tag = 'smem constant byte address 0x4 - core index']
  #allocation1 [shape = 'u32[144,128]{1,0:T(1,128)}', space=vmem, size = 0x12000, scoped, tag = 'internal scratch']
  %s0 = inlined_call_operand.vmem [shape: f32[2,810,256], index: 0, kind: input, shape index: {}]
  %s1 = inlined_call_operand.vmem [shape: f32[810,256], index: 1, kind: input, shape index: {}]
  %s2 = inlined_call_operand.vmem [shape: f32[1,256], index: 2, kind: input, shape index: {}]
  %s3 = inlined_call_operand.vmem [shape: f32[2,811,256], index: 3, kind: output, shape index: {}]
  %s4 = sld [smem:[#allocation0]]
  $region155: #{embedding_forward.1} parent=0
    _
  %s6 = ssub.s32 1, %s4
  %s7 = scalar_select 0, %s6, %s4
  $region1: #{embedding_forward.1} parent=0
    #allocation2 [shape = 'u8[835584]{0}', space=vmem, size = 0xcc000, scoped, tag = 'input window, operand 0']
    #allocation3 [shape = 'u8[835584]{0}', space=vmem, size = 0xcc000, scoped, tag = 'input window, operand 1']
    #allocation4 [shape = 'u8[835584]{0}', space=vmem, size = 0xcc000, scoped, tag = 'output window, operand 0']
    loop: start=0, step=1, limit=6
    $region2: #{embedding_forward.1} parent=1 // loop_pre_header
      _
    $region3: #{embedding_forward.1} parent=1 // loop_header
      %s9 = sphi 0, %s13
      %p10 = scmp.ge.s32.totalorder %s9, 6
      %s16 = sphi 0, %s28
      %s17 = sphi 0, %s24
      %s18 = sphi 0, %s16
      %s19 = sphi 0, %s17
      %s20 = sphi 0, %s18
      %s21 = sphi 0, %s19
      %s33 = sphi 0, %s35
      %s36 = sphi 0, %s33
      %s37 = sphi 0, %s36
      %s53 = sphi 0, %s37
      %s59 = sphi 0, %s61
      %s62 = sphi 0, %s59
      %s63 = sphi 0, %s62
      %s79 = sphi 0, %s63
      %s85 = sphi 0, %s87
      %s88 = sphi 0, %s85
      %s89 = sphi 0, %s88
      %s105 = sphi 0, %s89
      %s113 = sphi 0, %s115
      %s116 = sphi 0, %s113
      %s117 = sphi 0, %s116
      %s133 = sphi 0, %s117
    $region4: #{embedding_forward.1} parent=1 // loop_header_branch
      %12 = sbr.rel (%p10) target = $region8
    $region5: #{embedding_forward.1} parent=1 // loop_body
      %s14 = ssub.s32 %s9, 1
      %s15 = ssub.s32 %s9, 2
      %s22 = sadd.s32 1, %s17
      %p23 = scmp.ge.s32.totalorder %s22, 2
      %s24 = scalar_select %p23, 0, %s22
      %s25 = sadd.s32 1, %s16
      %s26 = scalar_select %p23, %s25, %s16
      %p27 = scmp.ge.s32.totalorder %s26, 2
      %s28 = scalar_select %p27, 0, %s26
      %s29 = ssub.s32 %s16, %s28
      %s30 = ssub.s32 %s17, %s24
      %s31 = sor.u32 %s29, %s30
      %p32 = scmp.eq.s32.totalorder %s31, 0
      %s34 = sadd.s32 %s33, 1
      %s35 = scalar_select %p32, %s33, %s34
      %p38 = pneg %p32
      %p39 = scmp.eq.s32.totalorder %s9, 3
      %p40 = por %p38, %p39
      %p41 = scmp.ne.s32.totalorder %s33, %s36
      %p42 = scmp.eq.s32.totalorder %s9, 0
      %p43 = por %p41, %p42
      %p44 = scmp.ne.s32.totalorder %s33, %s36
      %p45 = scmp.eq.s32.totalorder %s14, 3
      %p46 = por %p44, %p45
      %p47 = scmp.ne.s32.totalorder %s36, %s37
      %p48 = scmp.eq.s32.totalorder %s14, 0
      %p49 = por %p47, %p48
      %p50 = scmp.ne.s32.totalorder %s36, %s37
      %p51 = scmp.eq.s32.totalorder %s15, 3
      %p52 = por %p50, %p51
      %p54 = scmp.ne.s32.totalorder %s37, %s53
      %p55 = scmp.eq.s32.totalorder %s15, 0
      %p56 = por %p54, %p55
      %s57 = ssub.s32 %s17, %s24
      %p58 = scmp.eq.s32.totalorder %s57, 0
      %s60 = sadd.s32 %s59, 1
      %s61 = scalar_select %p58, %s59, %s60
      %p64 = pneg %p58
      %p65 = scmp.eq.s32.totalorder %s9, 3
      %p66 = por %p64, %p65
      %p67 = scmp.ne.s32.totalorder %s59, %s62
      %p68 = scmp.eq.s32.totalorder %s9, 0
      %p69 = por %p67, %p68
      %p70 = scmp.ne.s32.totalorder %s59, %s62
      %p71 = scmp.eq.s32.totalorder %s14, 3
      %p72 = por %p70, %p71
      %p73 = scmp.ne.s32.totalorder %s62, %s63
      %p74 = scmp.eq.s32.totalorder %s14, 0
      %p75 = por %p73, %p74
      %p76 = scmp.ne.s32.totalorder %s62, %s63
      %p77 = scmp.eq.s32.totalorder %s15, 3
      %p78 = por %p76, %p77
      %p80 = scmp.ne.s32.totalorder %s63, %s79
      %p81 = scmp.eq.s32.totalorder %s15, 0
      %p82 = por %p80, %p81
      %s83 = ssub.s32 %s17, %s24
      %p84 = scmp.eq.s32.totalorder %s83, 0
      %s86 = sadd.s32 %s85, 1
      %s87 = scalar_select %p84, %s85, %s86
      %p90 = pneg %p84
      %p91 = scmp.eq.s32.totalorder %s9, 3
      %p92 = por %p90, %p91
      %p93 = scmp.ne.s32.totalorder %s85, %s88
      %p94 = scmp.eq.s32.totalorder %s9, 0
      %p95 = por %p93, %p94
      %p96 = scmp.ne.s32.totalorder %s85, %s88
      %p97 = scmp.eq.s32.totalorder %s14, 3
      %p98 = por %p96, %p97
      %p99 = scmp.ne.s32.totalorder %s88, %s89
      %p100 = scmp.eq.s32.totalorder %s14, 0
      %p101 = por %p99, %p100
      %p102 = scmp.ne.s32.totalorder %s88, %s89
      %p103 = scmp.eq.s32.totalorder %s15, 3
      %p104 = por %p102, %p103
      %p106 = scmp.ne.s32.totalorder %s89, %s105
      %p107 = scmp.eq.s32.totalorder %s15, 0
      %p108 = por %p106, %p107
      %s109 = ssub.s32 %s16, %s28
      %s110 = ssub.s32 %s17, %s24
      %s111 = sor.u32 %s109, %s110
      %p112 = scmp.eq.s32.totalorder %s111, 0
      %s114 = sadd.s32 %s113, 1
      %s115 = scalar_select %p112, %s113, %s114
      %p118 = pneg %p112
      %p119 = scmp.eq.s32.totalorder %s9, 3
      %p120 = por %p118, %p119
      %p121 = scmp.ne.s32.totalorder %s113, %s116
      %p122 = scmp.eq.s32.totalorder %s9, 0
      %p123 = por %p121, %p122
      %p124 = scmp.ne.s32.totalorder %s113, %s116
      %p125 = scmp.eq.s32.totalorder %s14, 3
      %p126 = por %p124, %p125
      %p127 = scmp.ne.s32.totalorder %s116, %s117
      %p128 = scmp.eq.s32.totalorder %s14, 0
      %p129 = por %p127, %p128
      %p130 = scmp.ne.s32.totalorder %s116, %s117
      %p131 = scmp.eq.s32.totalorder %s15, 3
      %p132 = por %p130, %p131
      %p134 = scmp.ne.s32.totalorder %s117, %s133
      %p135 = scmp.eq.s32.totalorder %s15, 0
      %p136 = por %p134, %p135
      %p137 = scmp.le.s32.totalorder 1, %s9
      %p138 = scmp.lt.s32.totalorder %s9, 5
      %p139 = pnand %p137, %p138
      %p140 = pneg %p139
      // Predicated region
      $region9: #{embedding_forward.1} parent=5 // pred_check
        _
      $region10: #{embedding_forward.1} parent=5 // pred_check_branch
        %142 = sbr.rel (%p139) target = $region12
      $region11: #{embedding_forward.1} parent=5 // pred_region
        %s143 = ssub.s32 %s9, 1
      $region12: #{embedding_forward.1} parent=5 // pred_fallthru
        _
      %p144 = scmp.lt.s32.totalorder %s9, 4
      // Predicated region
      $region13: #{embedding_forward.1} parent=5 // pred_check
        %p145 = pneg %p144
      $region14: #{embedding_forward.1} parent=5 // pred_check_branch
        %147 = sbr.rel (%p145) target = $region16
      $region15: #{embedding_forward.1} parent=5 // pred_region
        // Predicated region
        $region17: #{embedding_forward.1} parent=15 // pred_check
          %p148 = pneg %p43
        $region18: #{embedding_forward.1} parent=15 // pred_check_branch
          %150 = sbr.rel (%p148) target = $region20
        $region19: #{embedding_forward.1} parent=15 // pred_region
          %s151 = sand.u32 %s33, 1
          %s152 = sand.u32 %s33, 1
          %s153 = smul.addr %s152, 816
          %s154 = scalar_lea.vmem [#allocation2], %s153
          %s155 = smul.addr %s16, 204
          %s156 = sadd.s32 %s17, %s155
          %s157 = smul.addr %s156, 8
          %s158 = scalar_lea.vmem %s0, %s157
          // Predicated region
          $region21: #{embedding_forward.1} parent=19 // pred_check
            _
          $region22: #{embedding_forward.1} parent=19 // pred_check_branch
            %160 = sbr.rel (0) target = $region24
          $region23: #{embedding_forward.1} parent=19 // pred_region
            // Predicated region
            $region25: #{embedding_forward.1} parent=23 // pred_check
              _
            $region26: #{embedding_forward.1} parent=23 // pred_check_branch
              %162 = sbr.rel (0) target = $region28
            $region27: #{embedding_forward.1} parent=23 // pred_region
              // Predicated region
              $region40: #{embedding_forward.1} parent=27 // pred_check
                _
              $region41: #{embedding_forward.1} parent=27 // pred_check_branch
                %379 = sbr.rel (0) target = $region43
              $region42: #{embedding_forward.1} parent=27 // pred_region
                loop: start=0, step=1, limit=1
                $region44: #{embedding_forward.1} parent=42 // loop_pre_header
                  _
                $region45: #{embedding_forward.1} parent=42 // loop_header
                  %s381 = sphi 0, %s385
                  %p382 = scmp.ge.s32.totalorder %s381, 1
                  %s386 = sphi %s158, %s158
                  %s387 = sphi %s154, %s154
                $region46: #{embedding_forward.1} parent=42 // loop_header_branch
                  %384 = sbr.rel (%p382) target = $region50
                $region47: #{embedding_forward.1} parent=42 // loop_body
                  %v388 = vld [vmem:[%s386] sm:$0xff]
                  %389 = vst [vmem:[%s387] sm:$0xff] %v388
                  %v390 = vld [vmem:[%s386 + $0x10] sm:$0xff]
                  %391 = vst [vmem:[%s387 + $0x8] sm:$0xff] %v390
                  %v392 = vld [vmem:[%s386 + $0x20] sm:$0xff]
                  %393 = vst [vmem:[%s387 + $0x10] sm:$0xff] %v392
                  %v394 = vld [vmem:[%s386 + $0x30] sm:$0xff]
                  %395 = vst [vmem:[%s387 + $0x18] sm:$0xff] %v394
                  %v396 = vld [vmem:[%s386 + $0x40] sm:$0xff]
                  %397 = vst [vmem:[%s387 + $0x20] sm:$0xff] %v396
                  %v398 = vld [vmem:[%s386 + $0x50] sm:$0xff]
                  %399 = vst [vmem:[%s387 + $0x28] sm:$0xff] %v398
                  %v400 = vld [vmem:[%s386 + $0x60] sm:$0xff]
                  %401 = vst [vmem:[%s387 + $0x30] sm:$0xff] %v400
                  %v402 = vld [vmem:[%s386 + $0x70] sm:$0xff]
                  %403 = vst [vmem:[%s387 + $0x38] sm:$0xff] %v402
                  %v404 = vld [vmem:[%s386 + $0x80] sm:$0xff]
                  %405 = vst [vmem:[%s387 + $0x40] sm:$0xff] %v404
                  %v406 = vld [vmem:[%s386 + $0x90] sm:$0xff]
                  %407 = vst [vmem:[%s387 + $0x48] sm:$0xff] %v406
                  %v408 = vld [vmem:[%s386 + $0xa0] sm:$0xff]
                  %409 = vst [vmem:[%s387 + $0x50] sm:$0xff] %v408
                  %v410 = vld [vmem:[%s386 + $0xb0] sm:$0xff]
                  %411 = vst [vmem:[%s387 + $0x58] sm:$0xff] %v410
                  %v412 = vld [vmem:[%s386 + $0xc0] sm:$0xff]
                  %413 = vst [vmem:[%s387 + $0x60] sm:$0xff] %v412
                  %v414 = vld [vmem:[%s386 + $0xd0] sm:$0xff]
                  %415 = vst [vmem:[%s387 + $0x68] sm:$0xff] %v414
                  %v416 = vld [vmem:[%s386 + $0xe0] sm:$0xff]
                  %417 = vst [vmem:[%s387 + $0x70] sm:$0xff] %v416
                  %v418 = vld [vmem:[%s386 + $0xf0] sm:$0xff]
                  %419 = vst [vmem:[%s387 + $0x78] sm:$0xff] %v418
                  %v420 = vld [vmem:[%s386 + $0x100] sm:$0xff]
                  %421 = vst [vmem:[%s387 + $0x80] sm:$0xff] %v420
                  %v422 = vld [vmem:[%s386 + $0x110] sm:$0xff]
                  %423 = vst [vmem:[%s387 + $0x88] sm:$0xff] %v422
                  %v424 = vld [vmem:[%s386 + $0x120] sm:$0xff]
                  %425 = vst [vmem:[%s387 + $0x90] sm:$0xff] %v424
                  %v426 = vld [vmem:[%s386 + $0x130] sm:$0xff]
                  %427 = vst [vmem:[%s387 + $0x98] sm:$0xff] %v426
                  %v428 = vld [vmem:[%s386 + $0x140] sm:$0xff]
                  %429 = vst [vmem:[%s387 + $0xa0] sm:$0xff] %v428
                  %v430 = vld [vmem:[%s386 + $0x150] sm:$0xff]
                  %431 = vst [vmem:[%s387 + $0xa8] sm:$0xff] %v430
                  %v432 = vld [vmem:[%s386 + $0x160] sm:$0xff]
                  %433 = vst [vmem:[%s387 + $0xb0] sm:$0xff] %v432
                  %v434 = vld [vmem:[%s386 + $0x170] sm:$0xff]
                  %435 = vst [vmem:[%s387 + $0xb8] sm:$0xff] %v434
                  %v436 = vld [vmem:[%s386 + $0x180] sm:$0xff]
                  %437 = vst [vmem:[%s387 + $0xc0] sm:$0xff] %v436
                  %v438 = vld [vmem:[%s386 + $0x190] sm:$0xff]
                  %439 = vst [vmem:[%s387 + $0xc8] sm:$0xff] %v438
                  %v440 = vld [vmem:[%s386 + $0x1a0] sm:$0xff]
                  %441 = vst [vmem:[%s387 + $0xd0] sm:$0xff] %v440
                  %v442 = vld [vmem:[%s386 + $0x1b0] sm:$0xff]
                  %443 = vst [vmem:[%s387 + $0xd8] sm:$0xff] %v442
                  %v444 = vld [vmem:[%s386 + $0x1c0] sm:$0xff]
                  %445 = vst [vmem:[%s387 + $0xe0] sm:$0xff] %v444
                  %v446 = vld [vmem:[%s386 + $0x1d0] sm:$0xff]
                  %447 = vst [vmem:[%s387 + $0xe8] sm:$0xff] %v446
                  %v448 = vld [vmem:[%s386 + $0x1e0] sm:$0xff]
                  %449 = vst [vmem:[%s387 + $0xf0] sm:$0xff] %v448
                  %v450 = vld [vmem:[%s386 + $0x1f0] sm:$0xff]
                  %451 = vst [vmem:[%s387 + $0xf8] sm:$0xff] %v450
                  %v452 = vld [vmem:[%s386 + $0x200] sm:$0xff]
                  %453 = vst [vmem:[%s387 + $0x100] sm:$0xff] %v452
                  %v454 = vld [vmem:[%s386 + $0x210] sm:$0xff]
                  %455 = vst [vmem:[%s387 + $0x108] sm:$0xff] %v454
                  %v456 = vld [vmem:[%s386 + $0x220] sm:$0xff]
                  %457 = vst [vmem:[%s387 + $0x110] sm:$0xff] %v456
                  %v458 = vld [vmem:[%s386 + $0x230] sm:$0xff]
                  %459 = vst [vmem:[%s387 + $0x118] sm:$0xff] %v458
                  %v460 = vld [vmem:[%s386 + $0x240] sm:$0xff]
                  %461 = vst [vmem:[%s387 + $0x120] sm:$0xff] %v460
                  %v462 = vld [vmem:[%s386 + $0x250] sm:$0xff]
                  %463 = vst [vmem:[%s387 + $0x128] sm:$0xff] %v462
                  %v464 = vld [vmem:[%s386 + $0x260] sm:$0xff]
                  %465 = vst [vmem:[%s387 + $0x130] sm:$0xff] %v464
                  %v466 = vld [vmem:[%s386 + $0x270] sm:$0xff]
                  %467 = vst [vmem:[%s387 + $0x138] sm:$0xff] %v466
                  %v468 = vld [vmem:[%s386 + $0x280] sm:$0xff]
                  %469 = vst [vmem:[%s387 + $0x140] sm:$0xff] %v468
                  %v470 = vld [vmem:[%s386 + $0x290] sm:$0xff]
                  %471 = vst [vmem:[%s387 + $0x148] sm:$0xff] %v470
                  %v472 = vld [vmem:[%s386 + $0x2a0] sm:$0xff]
                  %473 = vst [vmem:[%s387 + $0x150] sm:$0xff] %v472
                  %v474 = vld [vmem:[%s386 + $0x2b0] sm:$0xff]
                  %475 = vst [vmem:[%s387 + $0x158] sm:$0xff] %v474
                  %v476 = vld [vmem:[%s386 + $0x2c0] sm:$0xff]
                  %477 = vst [vmem:[%s387 + $0x160] sm:$0xff] %v476
                  %v478 = vld [vmem:[%s386 + $0x2d0] sm:$0xff]
                  %479 = vst [vmem:[%s387 + $0x168] sm:$0xff] %v478
                  %v480 = vld [vmem:[%s386 + $0x2e0] sm:$0xff]
                  %481 = vst [vmem:[%s387 + $0x170] sm:$0xff] %v480
                  %v482 = vld [vmem:[%s386 + $0x2f0] sm:$0xff]
                  %483 = vst [vmem:[%s387 + $0x178] sm:$0xff] %v482
                  %v484 = vld [vmem:[%s386 + $0x300] sm:$0xff]
                  %485 = vst [vmem:[%s387 + $0x180] sm:$0xff] %v484
                  %v486 = vld [vmem:[%s386 + $0x310] sm:$0xff]
                  %487 = vst [vmem:[%s387 + $0x188] sm:$0xff] %v486
                  %v488 = vld [vmem:[%s386 + $0x320] sm:$0xff]
                  %489 = vst [vmem:[%s387 + $0x190] sm:$0xff] %v488
                  %v490 = vld [vmem:[%s386 + $0x330] sm:$0xff]
                  %491 = vst [vmem:[%s387 + $0x198] sm:$0xff] %v490
                  %v492 = vld [vmem:[%s386 + $0x340] sm:$0xff]
                  %493 = vst [vmem:[%s387 + $0x1a0] sm:$0xff] %v492
                  %v494 = vld [vmem:[%s386 + $0x350] sm:$0xff]
                  %495 = vst [vmem:[%s387 + $0x1a8] sm:$0xff] %v494
                  %v496 = vld [vmem:[%s386 + $0x360] sm:$0xff]
                  %497 = vst [vmem:[%s387 + $0x1b0] sm:$0xff] %v496
                  %v498 = vld [vmem:[%s386 + $0x370] sm:$0xff]
                  %499 = vst [vmem:[%s387 + $0x1b8] sm:$0xff] %v498
                  %v500 = vld [vmem:[%s386 + $0x380] sm:$0xff]
                  %501 = vst [vmem:[%s387 + $0x1c0] sm:$0xff] %v500
                  %v502 = vld [vmem:[%s386 + $0x390] sm:$0xff]
                  %503 = vst [vmem:[%s387 + $0x1c8] sm:$0xff] %v502
                  %v504 = vld [vmem:[%s386 + $0x3a0] sm:$0xff]
                  %505 = vst [vmem:[%s387 + $0x1d0] sm:$0xff] %v504
                  %v506 = vld [vmem:[%s386 + $0x3b0] sm:$0xff]
                  %507 = vst [vmem:[%s387 + $0x1d8] sm:$0xff] %v506
                  %v508 = vld [vmem:[%s386 + $0x3c0] sm:$0xff]
                  %509 = vst [vmem:[%s387 + $0x1e0] sm:$0xff] %v508
                  %v510 = vld [vmem:[%s386 + $0x3d0] sm:$0xff]
                  %511 = vst [vmem:[%s387 + $0x1e8] sm:$0xff] %v510
                  %v512 = vld [vmem:[%s386 + $0x3e0] sm:$0xff]
                  %513 = vst [vmem:[%s387 + $0x1f0] sm:$0xff] %v512
                  %v514 = vld [vmem:[%s386 + $0x3f0] sm:$0xff]
                  %515 = vst [vmem:[%s387 + $0x1f8] sm:$0xff] %v514
                  %v516 = vld [vmem:[%s386 + $0x400] sm:$0xff]
                  %517 = vst [vmem:[%s387 + $0x200] sm:$0xff] %v516
                  %v518 = vld [vmem:[%s386 + $0x410] sm:$0xff]
                  %519 = vst [vmem:[%s387 + $0x208] sm:$0xff] %v518
                  %v520 = vld [vmem:[%s386 + $0x420] sm:$0xff]
                  %521 = vst [vmem:[%s387 + $0x210] sm:$0xff] %v520
                  %v522 = vld [vmem:[%s386 + $0x430] sm:$0xff]
                  %523 = vst [vmem:[%s387 + $0x218] sm:$0xff] %v522
                  %v524 = vld [vmem:[%s386 + $0x440] sm:$0xff]
                  %525 = vst [vmem:[%s387 + $0x220] sm:$0xff] %v524
                  %v526 = vld [vmem:[%s386 + $0x450] sm:$0xff]
                  %527 = vst [vmem:[%s387 + $0x228] sm:$0xff] %v526
                  %v528 = vld [vmem:[%s386 + $0x460] sm:$0xff]
                  %529 = vst [vmem:[%s387 + $0x230] sm:$0xff] %v528
                  %v530 = vld [vmem:[%s386 + $0x470] sm:$0xff]
                  %531 = vst [vmem:[%s387 + $0x238] sm:$0xff] %v530
                  %v532 = vld [vmem:[%s386 + $0x480] sm:$0xff]
                  %533 = vst [vmem:[%s387 + $0x240] sm:$0xff] %v532
                  %v534 = vld [vmem:[%s386 + $0x490] sm:$0xff]
                  %535 = vst [vmem:[%s387 + $0x248] sm:$0xff] %v534
                  %v536 = vld [vmem:[%s386 + $0x4a0] sm:$0xff]
                  %537 = vst [vmem:[%s387 + $0x250] sm:$0xff] %v536
                  %v538 = vld [vmem:[%s386 + $0x4b0] sm:$0xff]
                  %539 = vst [vmem:[%s387 + $0x258] sm:$0xff] %v538
                  %v540 = vld [vmem:[%s386 + $0x4c0] sm:$0xff]
                  %541 = vst [vmem:[%s387 + $0x260] sm:$0xff] %v540
                  %v542 = vld [vmem:[%s386 + $0x4d0] sm:$0xff]
                  %543 = vst [vmem:[%s387 + $0x268] sm:$0xff] %v542
                  %v544 = vld [vmem:[%s386 + $0x4e0] sm:$0xff]
                  %545 = vst [vmem:[%s387 + $0x270] sm:$0xff] %v544
                  %v546 = vld [vmem:[%s386 + $0x4f0] sm:$0xff]
                  %547 = vst [vmem:[%s387 + $0x278] sm:$0xff] %v546
                  %v548 = vld [vmem:[%s386 + $0x500] sm:$0xff]
                  %549 = vst [vmem:[%s387 + $0x280] sm:$0xff] %v548
                  %v550 = vld [vmem:[%s386 + $0x510] sm:$0xff]
                  %551 = vst [vmem:[%s387 + $0x288] sm:$0xff] %v550
                  %v552 = vld [vmem:[%s386 + $0x520] sm:$0xff]
                  %553 = vst [vmem:[%s387 + $0x290] sm:$0xff] %v552
                  %v554 = vld [vmem:[%s386 + $0x530] sm:$0xff]
                  %555 = vst [vmem:[%s387 + $0x298] sm:$0xff] %v554
                  %v556 = vld [vmem:[%s386 + $0x540] sm:$0xff]
                  %557 = vst [vmem:[%s387 + $0x2a0] sm:$0xff] %v556
                  %v558 = vld [vmem:[%s386 + $0x550] sm:$0xff]
                  %559 = vst [vmem:[%s387 + $0x2a8] sm:$0xff] %v558
                  %v560 = vld [vmem:[%s386 + $0x560] sm:$0xff]
                  %561 = vst [vmem:[%s387 + $0x2b0] sm:$0xff] %v560
                  %v562 = vld [vmem:[%s386 + $0x570] sm:$0xff]
                  %563 = vst [vmem:[%s387 + $0x2b8] sm:$0xff] %v562
                  %v564 = vld [vmem:[%s386 + $0x580] sm:$0xff]
                  %565 = vst [vmem:[%s387 + $0x2c0] sm:$0xff] %v564
                  %v566 = vld [vmem:[%s386 + $0x590] sm:$0xff]
                  %567 = vst [vmem:[%s387 + $0x2c8] sm:$0xff] %v566
                  %v568 = vld [vmem:[%s386 + $0x5a0] sm:$0xff]
                  %569 = vst [vmem:[%s387 + $0x2d0] sm:$0xff] %v568
                  %v570 = vld [vmem:[%s386 + $0x5b0] sm:$0xff]
                  %571 = vst [vmem:[%s387 + $0x2d8] sm:$0xff] %v570
                  %v572 = vld [vmem:[%s386 + $0x5c0] sm:$0xff]
                  %573 = vst [vmem:[%s387 + $0x2e0] sm:$0xff] %v572
                  %v574 = vld [vmem:[%s386 + $0x5d0] sm:$0xff]
                  %575 = vst [vmem:[%s387 + $0x2e8] sm:$0xff] %v574
                  %v576 = vld [vmem:[%s386 + $0x5e0] sm:$0xff]
                  %577 = vst [vmem:[%s387 + $0x2f0] sm:$0xff] %v576
                  %v578 = vld [vmem:[%s386 + $0x5f0] sm:$0xff]
                  %579 = vst [vmem:[%s387 + $0x2f8] sm:$0xff] %v578
                  %v580 = vld [vmem:[%s386 + $0x600] sm:$0xff]
                  %581 = vst [vmem:[%s387 + $0x300] sm:$0xff] %v580
                  %v582 = vld [vmem:[%s386 + $0x610] sm:$0xff]
                  %583 = vst [vmem:[%s387 + $0x308] sm:$0xff] %v582
                  %v584 = vld [vmem:[%s386 + $0x620] sm:$0xff]
                  %585 = vst [vmem:[%s387 + $0x310] sm:$0xff] %v584
                  %v586 = vld [vmem:[%s386 + $0x630] sm:$0xff]
                  %587 = vst [vmem:[%s387 + $0x318] sm:$0xff] %v586
                  %v588 = vld [vmem:[%s386 + $0x640] sm:$0xff]
                  %589 = vst [vmem:[%s387 + $0x320] sm:$0xff] %v588
                  %v590 = vld [vmem:[%s386 + $0x650] sm:$0xff]
                  %591 = vst [vmem:[%s387 + $0x328] sm:$0xff] %v590
                $region48: #{embedding_forward.1} parent=42 // loop_footer
                  %s385 = sadd.s32 1, %s381
                $region49: #{embedding_forward.1} parent=42 // loop_footer_branch
                  %380 = sbr.rel target = $region45
                $region50: #{embedding_forward.1} parent=42 // loop_exit
                  _
              $region43: #{embedding_forward.1} parent=27 // pred_fallthru
                _
              // Predicated region
              $region51: #{embedding_forward.1} parent=27 // pred_check
                _
              $region52: #{embedding_forward.1} parent=27 // pred_check_branch
                %593 = sbr.rel target = $region54
              $region53: #{embedding_forward.1} parent=27 // pred_region
                _
              $region54: #{embedding_forward.1} parent=27 // pred_fallthru
                _
            $region28: #{embedding_forward.1} parent=23 // pred_fallthru
              _
            // Predicated region
            $region29: #{embedding_forward.1} parent=23 // pred_check
              _
            $region30: #{embedding_forward.1} parent=23 // pred_check_branch
              %164 = sbr.rel target = $region32
            $region31: #{embedding_forward.1} parent=23 // pred_region
              loop: start=0, step=1, limit=1
              $region33: #{embedding_forward.1} parent=31 // loop_pre_header
                _
              $region34: #{embedding_forward.1} parent=31 // loop_header
                %s167 = sphi 0, %s171
                %p168 = scmp.ge.s32.totalorder %s167, 1
                %s172 = sphi %s158, %s158
                %s173 = sphi %s154, %s154
              $region35: #{embedding_forward.1} parent=31 // loop_header_branch
                %170 = sbr.rel (%p168) target = $region39
              $region36: #{embedding_forward.1} parent=31 // loop_body
                %v174 = vld [vmem:[%s172] sm:$0xff]
                %175 = vst [vmem:[%s173] sm:$0xff] %v174
                %v176 = vld [vmem:[%s172 + $0x10] sm:$0xff]
                %177 = vst [vmem:[%s173 + $0x8] sm:$0xff] %v176
                %v178 = vld [vmem:[%s172 + $0x20] sm:$0xff]
                %179 = vst [vmem:[%s173 + $0x10] sm:$0xff] %v178
                %v180 = vld [vmem:[%s172 + $0x30] sm:$0xff]
                %181 = vst [vmem:[%s173 + $0x18] sm:$0xff] %v180
                %v182 = vld [vmem:[%s172 + $0x40] sm:$0xff]
                %183 = vst [vmem:[%s173 + $0x20] sm:$0xff] %v182
                %v184 = vld [vmem:[%s172 + $0x50] sm:$0xff]
                %185 = vst [vmem:[%s173 + $0x28] sm:$0xff] %v184
                %v186 = vld [vmem:[%s172 + $0x60] sm:$0xff]
                %187 = vst [vmem:[%s173 + $0x30] sm:$0xff] %v186
                %v188 = vld [vmem:[%s172 + $0x70] sm:$0xff]
                %189 = vst [vmem:[%s173 + $0x38] sm:$0xff] %v188
                %v190 = vld [vmem:[%s172 + $0x80] sm:$0xff]
                %191 = vst [vmem:[%s173 + $0x40] sm:$0xff] %v190
                %v192 = vld [vmem:[%s172 + $0x90] sm:$0xff]
                %193 = vst [vmem:[%s173 + $0x48] sm:$0xff] %v192
                %v194 = vld [vmem:[%s172 + $0xa0] sm:$0xff]
                %195 = vst [vmem:[%s173 + $0x50] sm:$0xff] %v194
                %v196 = vld [vmem:[%s172 + $0xb0] sm:$0xff]
                %197 = vst [vmem:[%s173 + $0x58] sm:$0xff] %v196
                %v198 = vld [vmem:[%s172 + $0xc0] sm:$0xff]
                %199 = vst [vmem:[%s173 + $0x60] sm:$0xff] %v198
                %v200 = vld [vmem:[%s172 + $0xd0] sm:$0xff]
                %201 = vst [vmem:[%s173 + $0x68] sm:$0xff] %v200
                %v202 = vld [vmem:[%s172 + $0xe0] sm:$0xff]
                %203 = vst [vmem:[%s173 + $0x70] sm:$0xff] %v202
                %v204 = vld [vmem:[%s172 + $0xf0] sm:$0xff]
                %205 = vst [vmem:[%s173 + $0x78] sm:$0xff] %v204
                %v206 = vld [vmem:[%s172 + $0x100] sm:$0xff]
                %207 = vst [vmem:[%s173 + $0x80] sm:$0xff] %v206
                %v208 = vld [vmem:[%s172 + $0x110] sm:$0xff]
                %209 = vst [vmem:[%s173 + $0x88] sm:$0xff] %v208
                %v210 = vld [vmem:[%s172 + $0x120] sm:$0xff]
                %211 = vst [vmem:[%s173 + $0x90] sm:$0xff] %v210
                %v212 = vld [vmem:[%s172 + $0x130] sm:$0xff]
                %213 = vst [vmem:[%s173 + $0x98] sm:$0xff] %v212
                %v214 = vld [vmem:[%s172 + $0x140] sm:$0xff]
                %215 = vst [vmem:[%s173 + $0xa0] sm:$0xff] %v214
                %v216 = vld [vmem:[%s172 + $0x150] sm:$0xff]
                %217 = vst [vmem:[%s173 + $0xa8] sm:$0xff] %v216
                %v218 = vld [vmem:[%s172 + $0x160] sm:$0xff]
                %219 = vst [vmem:[%s173 + $0xb0] sm:$0xff] %v218
                %v220 = vld [vmem:[%s172 + $0x170] sm:$0xff]
                %221 = vst [vmem:[%s173 + $0xb8] sm:$0xff] %v220
                %v222 = vld [vmem:[%s172 + $0x180] sm:$0xff]
                %223 = vst [vmem:[%s173 + $0xc0] sm:$0xff] %v222
                %v224 = vld [vmem:[%s172 + $0x190] sm:$0xff]
                %225 = vst [vmem:[%s173 + $0xc8] sm:$0xff] %v224
                %v226 = vld [vmem:[%s172 + $0x1a0] sm:$0xff]
                %227 = vst [vmem:[%s173 + $0xd0] sm:$0xff] %v226
                %v228 = vld [vmem:[%s172 + $0x1b0] sm:$0xff]
                %229 = vst [vmem:[%s173 + $0xd8] sm:$0xff] %v228
                %v230 = vld [vmem:[%s172 + $0x1c0] sm:$0xff]
                %231 = vst [vmem:[%s173 + $0xe0] sm:$0xff] %v230
                %v232 = vld [vmem:[%s172 + $0x1d0] sm:$0xff]
                %233 = vst [vmem:[%s173 + $0xe8] sm:$0xff] %v232
                %v234 = vld [vmem:[%s172 + $0x1e0] sm:$0xff]
                %235 = vst [vmem:[%s173 + $0xf0] sm:$0xff] %v234
                %v236 = vld [vmem:[%s172 + $0x1f0] sm:$0xff]
                %237 = vst [vmem:[%s173 + $0xf8] sm:$0xff] %v236
                %v238 = vld [vmem:[%s172 + $0x200] sm:$0xff]
                %239 = vst [vmem:[%s173 + $0x100] sm:$0xff] %v238
                %v240 = vld [vmem:[%s172 + $0x210] sm:$0xff]
                %241 = vst [vmem:[%s173 + $0x108] sm:$0xff] %v240
                %v242 = vld [vmem:[%s172 + $0x220] sm:$0xff]
                %243 = vst [vmem:[%s173 + $0x110] sm:$0xff] %v242
                %v244 = vld [vmem:[%s172 + $0x230] sm:$0xff]
                %245 = vst [vmem:[%s173 + $0x118] sm:$0xff] %v244
                %v246 = vld [vmem:[%s172 + $0x240] sm:$0xff]
                %247 = vst [vmem:[%s173 + $0x120] sm:$0xff] %v246
                %v248 = vld [vmem:[%s172 + $0x250] sm:$0xff]
                %249 = vst [vmem:[%s173 + $0x128] sm:$0xff] %v248
                %v250 = vld [vmem:[%s172 + $0x260] sm:$0xff]
                %251 = vst [vmem:[%s173 + $0x130] sm:$0xff] %v250
                %v252 = vld [vmem:[%s172 + $0x270] sm:$0xff]
                %253 = vst [vmem:[%s173 + $0x138] sm:$0xff] %v252
                %v254 = vld [vmem:[%s172 + $0x280] sm:$0xff]
                %255 = vst [vmem:[%s173 + $0x140] sm:$0xff] %v254
                %v256 = vld [vmem:[%s172 + $0x290] sm:$0xff]
                %257 = vst [vmem:[%s173 + $0x148] sm:$0xff] %v256
                %v258 = vld [vmem:[%s172 + $0x2a0] sm:$0xff]
                %259 = vst [vmem:[%s173 + $0x150] sm:$0xff] %v258
                %v260 = vld [vmem:[%s172 + $0x2b0] sm:$0xff]
                %261 = vst [vmem:[%s173 + $0x158] sm:$0xff] %v260
                %v262 = vld [vmem:[%s172 + $0x2c0] sm:$0xff]
                %263 = vst [vmem:[%s173 + $0x160] sm:$0xff] %v262
                %v264 = vld [vmem:[%s172 + $0x2d0] sm:$0xff]
                %265 = vst [vmem:[%s173 + $0x168] sm:$0xff] %v264
                %v266 = vld [vmem:[%s172 + $0x2e0] sm:$0xff]
                %267 = vst [vmem:[%s173 + $0x170] sm:$0xff] %v266
                %v268 = vld [vmem:[%s172 + $0x2f0] sm:$0xff]
                %269 = vst [vmem:[%s173 + $0x178] sm:$0xff] %v268
                %v270 = vld [vmem:[%s172 + $0x300] sm:$0xff]
                %271 = vst [vmem:[%s173 + $0x180] sm:$0xff] %v270
                %v272 = vld [vmem:[%s172 + $0x310] sm:$0xff]
                %273 = vst [vmem:[%s173 + $0x188] sm:$0xff] %v272
                %v274 = vld [vmem:[%s172 + $0x320] sm:$0xff]
                %275 = vst [vmem:[%s173 + $0x190] sm:$0xff] %v274
                %v276 = vld [vmem:[%s172 + $0x330] sm:$0xff]
                %277 = vst [vmem:[%s173 + $0x198] sm:$0xff] %v276
                %v278 = vld [vmem:[%s172 + $0x340] sm:$0xff]
                %279 = vst [vmem:[%s173 + $0x1a0] sm:$0xff] %v278
                %v280 = vld [vmem:[%s172 + $0x350] sm:$0xff]
                %281 = vst [vmem:[%s173 + $0x1a8] sm:$0xff] %v280
                %v282 = vld [vmem:[%s172 + $0x360] sm:$0xff]
                %283 = vst [vmem:[%s173 + $0x1b0] sm:$0xff] %v282
                %v284 = vld [vmem:[%s172 + $0x370] sm:$0xff]
                %285 = vst [vmem:[%s173 + $0x1b8] sm:$0xff] %v284
                %v286 = vld [vmem:[%s172 + $0x380] sm:$0xff]
                %287 = vst [vmem:[%s173 + $0x1c0] sm:$0xff] %v286
                %v288 = vld [vmem:[%s172 + $0x390] sm:$0xff]
                %289 = vst [vmem:[%s173 + $0x1c8] sm:$0xff] %v288
                %v290 = vld [vmem:[%s172 + $0x3a0] sm:$0xff]
                %291 = vst [vmem:[%s173 + $0x1d0] sm:$0xff] %v290
                %v292 = vld [vmem:[%s172 + $0x3b0] sm:$0xff]
                %293 = vst [vmem:[%s173 + $0x1d8] sm:$0xff] %v292
                %v294 = vld [vmem:[%s172 + $0x3c0] sm:$0xff]
                %295 = vst [vmem:[%s173 + $0x1e0] sm:$0xff] %v294
                %v296 = vld [vmem:[%s172 + $0x3d0] sm:$0xff]
                %297 = vst [vmem:[%s173 + $0x1e8] sm:$0xff] %v296
                %v298 = vld [vmem:[%s172 + $0x3e0] sm:$0xff]
                %299 = vst [vmem:[%s173 + $0x1f0] sm:$0xff] %v298
                %v300 = vld [vmem:[%s172 + $0x3f0] sm:$0xff]
                %301 = vst [vmem:[%s173 + $0x1f8] sm:$0xff] %v300
                %v302 = vld [vmem:[%s172 + $0x400] sm:$0xff]
                %303 = vst [vmem:[%s173 + $0x200] sm:$0xff] %v302
                %v304 = vld [vmem:[%s172 + $0x410] sm:$0xff]
                %305 = vst [vmem:[%s173 + $0x208] sm:$0xff] %v304
                %v306 = vld [vmem:[%s172 + $0x420] sm:$0xff]
                %307 = vst [vmem:[%s173 + $0x210] sm:$0xff] %v306
                %v308 = vld [vmem:[%s172 + $0x430] sm:$0xff]
                %309 = vst [vmem:[%s173 + $0x218] sm:$0xff] %v308
                %v310 = vld [vmem:[%s172 + $0x440] sm:$0xff]
                %311 = vst [vmem:[%s173 + $0x220] sm:$0xff] %v310
                %v312 = vld [vmem:[%s172 + $0x450] sm:$0xff]
                %313 = vst [vmem:[%s173 + $0x228] sm:$0xff] %v312
                %v314 = vld [vmem:[%s172 + $0x460] sm:$0xff]
                %315 = vst [vmem:[%s173 + $0x230] sm:$0xff] %v314
                %v316 = vld [vmem:[%s172 + $0x470] sm:$0xff]
                %317 = vst [vmem:[%s173 + $0x238] sm:$0xff] %v316
                %v318 = vld [vmem:[%s172 + $0x480] sm:$0xff]
                %319 = vst [vmem:[%s173 + $0x240] sm:$0xff] %v318
                %v320 = vld [vmem:[%s172 + $0x490] sm:$0xff]
                %321 = vst [vmem:[%s173 + $0x248] sm:$0xff] %v320
                %v322 = vld [vmem:[%s172 + $0x4a0] sm:$0xff]
                %323 = vst [vmem:[%s173 + $0x250] sm:$0xff] %v322
                %v324 = vld [vmem:[%s172 + $0x4b0] sm:$0xff]
                %325 = vst [vmem:[%s173 + $0x258] sm:$0xff] %v324
                %v326 = vld [vmem:[%s172 + $0x4c0] sm:$0xff]
                %327 = vst [vmem:[%s173 + $0x260] sm:$0xff] %v326
                %v328 = vld [vmem:[%s172 + $0x4d0] sm:$0xff]
                %329 = vst [vmem:[%s173 + $0x268] sm:$0xff] %v328
                %v330 = vld [vmem:[%s172 + $0x4e0] sm:$0xff]
                %331 = vst [vmem:[%s173 + $0x270] sm:$0xff] %v330
                %v332 = vld [vmem:[%s172 + $0x4f0] sm:$0xff]
                %333 = vst [vmem:[%s173 + $0x278] sm:$0xff] %v332
                %v334 = vld [vmem:[%s172 + $0x500] sm:$0xff]
                %335 = vst [vmem:[%s173 + $0x280] sm:$0xff] %v334
                %v336 = vld [vmem:[%s172 + $0x510] sm:$0xff]
                %337 = vst [vmem:[%s173 + $0x288] sm:$0xff] %v336
                %v338 = vld [vmem:[%s172 + $0x520] sm:$0xff]
                %339 = vst [vmem:[%s173 + $0x290] sm:$0xff] %v338
                %v340 = vld [vmem:[%s172 + $0x530] sm:$0xff]
                %341 = vst [vmem:[%s173 + $0x298] sm:$0xff] %v340
                %v342 = vld [vmem:[%s172 + $0x540] sm:$0xff]
                %343 = vst [vmem:[%s173 + $0x2a0] sm:$0xff] %v342
                %v344 = vld [vmem:[%s172 + $0x550] sm:$0xff]
                %345 = vst [vmem:[%s173 + $0x2a8] sm:$0xff] %v344
                %v346 = vld [vmem:[%s172 + $0x560] sm:$0xff]
                %347 = vst [vmem:[%s173 + $0x2b0] sm:$0xff] %v346
                %v348 = vld [vmem:[%s172 + $0x570] sm:$0xff]
                %349 = vst [vmem:[%s173 + $0x2b8] sm:$0xff] %v348
                %v350 = vld [vmem:[%s172 + $0x580] sm:$0xff]
                %351 = vst [vmem:[%s173 + $0x2c0] sm:$0xff] %v350
                %v352 = vld [vmem:[%s172 + $0x590] sm:$0xff]
                %353 = vst [vmem:[%s173 + $0x2c8] sm:$0xff] %v352
                %v354 = vld [vmem:[%s172 + $0x5a0] sm:$0xff]
                %355 = vst [vmem:[%s173 + $0x2d0] sm:$0xff] %v354
                %v356 = vld [vmem:[%s172 + $0x5b0] sm:$0xff]
                %357 = vst [vmem:[%s173 + $0x2d8] sm:$0xff] %v356
                %v358 = vld [vmem:[%s172 + $0x5c0] sm:$0xff]
                %359 = vst [vmem:[%s173 + $0x2e0] sm:$0xff] %v358
                %v360 = vld [vmem:[%s172 + $0x5d0] sm:$0xff]
                %361 = vst [vmem:[%s173 + $0x2e8] sm:$0xff] %v360
                %v362 = vld [vmem:[%s172 + $0x5e0] sm:$0xff]
                %363 = vst [vmem:[%s173 + $0x2f0] sm:$0xff] %v362
                %v364 = vld [vmem:[%s172 + $0x5f0] sm:$0xff]
                %365 = vst [vmem:[%s173 + $0x2f8] sm:$0xff] %v364
                %v366 = vld [vmem:[%s172 + $0x600] sm:$0xff]
                %367 = vst [vmem:[%s173 + $0x300] sm:$0xff] %v366
                %v368 = vld [vmem:[%s172 + $0x610] sm:$0xff]
                %369 = vst [vmem:[%s173 + $0x308] sm:$0xff] %v368
                %v370 = vld [vmem:[%s172 + $0x620] sm:$0xff]
                %371 = vst [vmem:[%s173 + $0x310] sm:$0xff] %v370
                %v372 = vld [vmem:[%s172 + $0x630] sm:$0xff]
                %373 = vst [vmem:[%s173 + $0x318] sm:$0xff] %v372
                %v374 = vld [vmem:[%s172 + $0x640] sm:$0xff]
                %375 = vst [vmem:[%s173 + $0x320] sm:$0xff] %v374
                %v376 = vld [vmem:[%s172 + $0x650] sm:$0xff]
                %377 = vst [vmem:[%s173 + $0x328] sm:$0xff] %v376
              $region37: #{embedding_forward.1} parent=31 // loop_footer
                %s171 = sadd.s32 1, %s167
              $region38: #{embedding_forward.1} parent=31 // loop_footer_branch
                %166 = sbr.rel target = $region34
              $region39: #{embedding_forward.1} parent=31 // loop_exit
                _
            $region32: #{embedding_forward.1} parent=23 // pred_fallthru
              _
          $region24: #{embedding_forward.1} parent=19 // pred_fallthru
            _
          %594 = vnop
        $region20: #{embedding_forward.1} parent=15 // pred_fallthru
          _
        // Predicated region
        $region55: #{embedding_forward.1} parent=15 // pred_check
          %p595 = pneg %p69
        $region56: #{embedding_forward.1} parent=15 // pred_check_branch
          %597 = sbr.rel (%p595) target = $region58
        $region57: #{embedding_forward.1} parent=15 // pred_region
          %s598 = sand.u32 %s59, 1
          %s599 = sand.u32 %s59, 1
          %s600 = smul.addr %s599, 816
          %s601 = scalar_lea.vmem [#allocation3], %s600
          %s602 = smul.addr %s17, 8
          %s603 = scalar_lea.vmem %s1, %s602
          // Predicated region
          $region59: #{embedding_forward.1} parent=57 // pred_check
            _
          $region60: #{embedding_forward.1} parent=57 // pred_check_branch
            %605 = sbr.rel (0) target = $region62
          $region61: #{embedding_forward.1} parent=57 // pred_region
            // Predicated region
            $region63: #{embedding_forward.1} parent=61 // pred_check
              _
            $region64: #{embedding_forward.1} parent=61 // pred_check_branch
              %607 = sbr.rel (0) target = $region66
            $region65: #{embedding_forward.1} parent=61 // pred_region
              // Predicated region
              $region78: #{embedding_forward.1} parent=65 // pred_check
                _
              $region79: #{embedding_forward.1} parent=65 // pred_check_branch
                %824 = sbr.rel (0) target = $region81
              $region80: #{embedding_forward.1} parent=65 // pred_region
                loop: start=0, step=1, limit=1
                $region82: #{embedding_forward.1} parent=80 // loop_pre_header
                  _
                $region83: #{embedding_forward.1} parent=80 // loop_header
                  %s826 = sphi 0, %s830
                  %p827 = scmp.ge.s32.totalorder %s826, 1
                  %s831 = sphi %s603, %s603
                  %s832 = sphi %s601, %s601
                $region84: #{embedding_forward.1} parent=80 // loop_header_branch
                  %829 = sbr.rel (%p827) target = $region88
                $region85: #{embedding_forward.1} parent=80 // loop_body
                  %v833 = vld [vmem:[%s831] sm:$0xff]
                  %834 = vst [vmem:[%s832] sm:$0xff] %v833
                  %v835 = vld [vmem:[%s831 + $0x10] sm:$0xff]
                  %836 = vst [vmem:[%s832 + $0x8] sm:$0xff] %v835
                  %v837 = vld [vmem:[%s831 + $0x20] sm:$0xff]
                  %838 = vst [vmem:[%s832 + $0x10] sm:$0xff] %v837
                  %v839 = vld [vmem:[%s831 + $0x30] sm:$0xff]
                  %840 = vst [vmem:[%s832 + $0x18] sm:$0xff] %v839
                  %v841 = vld [vmem:[%s831 + $0x40] sm:$0xff]
                  %842 = vst [vmem:[%s832 + $0x20] sm:$0xff] %v841
                  %v843 = vld [vmem:[%s831 + $0x50] sm:$0xff]
                  %844 = vst [vmem:[%s832 + $0x28] sm:$0xff] %v843
                  %v845 = vld [vmem:[%s831 + $0x60] sm:$0xff]
                  %846 = vst [vmem:[%s832 + $0x30] sm:$0xff] %v845
                  %v847 = vld [vmem:[%s831 + $0x70] sm:$0xff]
                  %848 = vst [vmem:[%s832 + $0x38] sm:$0xff] %v847
                  %v849 = vld [vmem:[%s831 + $0x80] sm:$0xff]
                  %850 = vst [vmem:[%s832 + $0x40] sm:$0xff] %v849
                  %v851 = vld [vmem:[%s831 + $0x90] sm:$0xff]
                  %852 = vst [vmem:[%s832 + $0x48] sm:$0xff] %v851
                  %v853 = vld [vmem:[%s831 + $0xa0] sm:$0xff]
                  %854 = vst [vmem:[%s832 + $0x50] sm:$0xff] %v853
                  %v855 = vld [vmem:[%s831 + $0xb0] sm:$0xff]
                  %856 = vst [vmem:[%s832 + $0x58] sm:$0xff] %v855
                  %v857 = vld [vmem:[%s831 + $0xc0] sm:$0xff]
                  %858 = vst [vmem:[%s832 + $0x60] sm:$0xff] %v857
                  %v859 = vld [vmem:[%s831 + $0xd0] sm:$0xff]
                  %860 = vst [vmem:[%s832 + $0x68] sm:$0xff] %v859
                  %v861 = vld [vmem:[%s831 + $0xe0] sm:$0xff]
                  %862 = vst [vmem:[%s832 + $0x70] sm:$0xff] %v861
                  %v863 = vld [vmem:[%s831 + $0xf0] sm:$0xff]
                  %864 = vst [vmem:[%s832 + $0x78] sm:$0xff] %v863
                  %v865 = vld [vmem:[%s831 + $0x100] sm:$0xff]
                  %866 = vst [vmem:[%s832 + $0x80] sm:$0xff] %v865
                  %v867 = vld [vmem:[%s831 + $0x110] sm:$0xff]
                  %868 = vst [vmem:[%s832 + $0x88] sm:$0xff] %v867
                  %v869 = vld [vmem:[%s831 + $0x120] sm:$0xff]
                  %870 = vst [vmem:[%s832 + $0x90] sm:$0xff] %v869
                  %v871 = vld [vmem:[%s831 + $0x130] sm:$0xff]
                  %872 = vst [vmem:[%s832 + $0x98] sm:$0xff] %v871
                  %v873 = vld [vmem:[%s831 + $0x140] sm:$0xff]
                  %874 = vst [vmem:[%s832 + $0xa0] sm:$0xff] %v873
                  %v875 = vld [vmem:[%s831 + $0x150] sm:$0xff]
                  %876 = vst [vmem:[%s832 + $0xa8] sm:$0xff] %v875
                  %v877 = vld [vmem:[%s831 + $0x160] sm:$0xff]
                  %878 = vst [vmem:[%s832 + $0xb0] sm:$0xff] %v877
                  %v879 = vld [vmem:[%s831 + $0x170] sm:$0xff]
                  %880 = vst [vmem:[%s832 + $0xb8] sm:$0xff] %v879
                  %v881 = vld [vmem:[%s831 + $0x180] sm:$0xff]
                  %882 = vst [vmem:[%s832 + $0xc0] sm:$0xff] %v881
                  %v883 = vld [vmem:[%s831 + $0x190] sm:$0xff]
                  %884 = vst [vmem:[%s832 + $0xc8] sm:$0xff] %v883
                  %v885 = vld [vmem:[%s831 + $0x1a0] sm:$0xff]
                  %886 = vst [vmem:[%s832 + $0xd0] sm:$0xff] %v885
                  %v887 = vld [vmem:[%s831 + $0x1b0] sm:$0xff]
                  %888 = vst [vmem:[%s832 + $0xd8] sm:$0xff] %v887
                  %v889 = vld [vmem:[%s831 + $0x1c0] sm:$0xff]
                  %890 = vst [vmem:[%s832 + $0xe0] sm:$0xff] %v889
                  %v891 = vld [vmem:[%s831 + $0x1d0] sm:$0xff]
                  %892 = vst [vmem:[%s832 + $0xe8] sm:$0xff] %v891
                  %v893 = vld [vmem:[%s831 + $0x1e0] sm:$0xff]
                  %894 = vst [vmem:[%s832 + $0xf0] sm:$0xff] %v893
                  %v895 = vld [vmem:[%s831 + $0x1f0] sm:$0xff]
                  %896 = vst [vmem:[%s832 + $0xf8] sm:$0xff] %v895
                  %v897 = vld [vmem:[%s831 + $0x200] sm:$0xff]
                  %898 = vst [vmem:[%s832 + $0x100] sm:$0xff] %v897
                  %v899 = vld [vmem:[%s831 + $0x210] sm:$0xff]
                  %900 = vst [vmem:[%s832 + $0x108] sm:$0xff] %v899
                  %v901 = vld [vmem:[%s831 + $0x220] sm:$0xff]
                  %902 = vst [vmem:[%s832 + $0x110] sm:$0xff] %v901
                  %v903 = vld [vmem:[%s831 + $0x230] sm:$0xff]
                  %904 = vst [vmem:[%s832 + $0x118] sm:$0xff] %v903
                  %v905 = vld [vmem:[%s831 + $0x240] sm:$0xff]
                  %906 = vst [vmem:[%s832 + $0x120] sm:$0xff] %v905
                  %v907 = vld [vmem:[%s831 + $0x250] sm:$0xff]
                  %908 = vst [vmem:[%s832 + $0x128] sm:$0xff] %v907
                  %v909 = vld [vmem:[%s831 + $0x260] sm:$0xff]
                  %910 = vst [vmem:[%s832 + $0x130] sm:$0xff] %v909
                  %v911 = vld [vmem:[%s831 + $0x270] sm:$0xff]
                  %912 = vst [vmem:[%s832 + $0x138] sm:$0xff] %v911
                  %v913 = vld [vmem:[%s831 + $0x280] sm:$0xff]
                  %914 = vst [vmem:[%s832 + $0x140] sm:$0xff] %v913
                  %v915 = vld [vmem:[%s831 + $0x290] sm:$0xff]
                  %916 = vst [vmem:[%s832 + $0x148] sm:$0xff] %v915
                  %v917 = vld [vmem:[%s831 + $0x2a0] sm:$0xff]
                  %918 = vst [vmem:[%s832 + $0x150] sm:$0xff] %v917
                  %v919 = vld [vmem:[%s831 + $0x2b0] sm:$0xff]
                  %920 = vst [vmem:[%s832 + $0x158] sm:$0xff] %v919
                  %v921 = vld [vmem:[%s831 + $0x2c0] sm:$0xff]
                  %922 = vst [vmem:[%s832 + $0x160] sm:$0xff] %v921
                  %v923 = vld [vmem:[%s831 + $0x2d0] sm:$0xff]
                  %924 = vst [vmem:[%s832 + $0x168] sm:$0xff] %v923
                  %v925 = vld [vmem:[%s831 + $0x2e0] sm:$0xff]
                  %926 = vst [vmem:[%s832 + $0x170] sm:$0xff] %v925
                  %v927 = vld [vmem:[%s831 + $0x2f0] sm:$0xff]
                  %928 = vst [vmem:[%s832 + $0x178] sm:$0xff] %v927
                  %v929 = vld [vmem:[%s831 + $0x300] sm:$0xff]
                  %930 = vst [vmem:[%s832 + $0x180] sm:$0xff] %v929
                  %v931 = vld [vmem:[%s831 + $0x310] sm:$0xff]
                  %932 = vst [vmem:[%s832 + $0x188] sm:$0xff] %v931
                  %v933 = vld [vmem:[%s831 + $0x320] sm:$0xff]
                  %934 = vst [vmem:[%s832 + $0x190] sm:$0xff] %v933
                  %v935 = vld [vmem:[%s831 + $0x330] sm:$0xff]
                  %936 = vst [vmem:[%s832 + $0x198] sm:$0xff] %v935
                  %v937 = vld [vmem:[%s831 + $0x340] sm:$0xff]
                  %938 = vst [vmem:[%s832 + $0x1a0] sm:$0xff] %v937
                  %v939 = vld [vmem:[%s831 + $0x350] sm:$0xff]
                  %940 = vst [vmem:[%s832 + $0x1a8] sm:$0xff] %v939
                  %v941 = vld [vmem:[%s831 + $0x360] sm:$0xff]
                  %942 = vst [vmem:[%s832 + $0x1b0] sm:$0xff] %v941
                  %v943 = vld [vmem:[%s831 + $0x370] sm:$0xff]
                  %944 = vst [vmem:[%s832 + $0x1b8] sm:$0xff] %v943
                  %v945 = vld [vmem:[%s831 + $0x380] sm:$0xff]
                  %946 = vst [vmem:[%s832 + $0x1c0] sm:$0xff] %v945
                  %v947 = vld [vmem:[%s831 + $0x390] sm:$0xff]
                  %948 = vst [vmem:[%s832 + $0x1c8] sm:$0xff] %v947
                  %v949 = vld [vmem:[%s831 + $0x3a0] sm:$0xff]
                  %950 = vst [vmem:[%s832 + $0x1d0] sm:$0xff] %v949
                  %v951 = vld [vmem:[%s831 + $0x3b0] sm:$0xff]
                  %952 = vst [vmem:[%s832 + $0x1d8] sm:$0xff] %v951
                  %v953 = vld [vmem:[%s831 + $0x3c0] sm:$0xff]
                  %954 = vst [vmem:[%s832 + $0x1e0] sm:$0xff] %v953
                  %v955 = vld [vmem:[%s831 + $0x3d0] sm:$0xff]
                  %956 = vst [vmem:[%s832 + $0x1e8] sm:$0xff] %v955
                  %v957 = vld [vmem:[%s831 + $0x3e0] sm:$0xff]
                  %958 = vst [vmem:[%s832 + $0x1f0] sm:$0xff] %v957
                  %v959 = vld [vmem:[%s831 + $0x3f0] sm:$0xff]
                  %960 = vst [vmem:[%s832 + $0x1f8] sm:$0xff] %v959
                  %v961 = vld [vmem:[%s831 + $0x400] sm:$0xff]
                  %962 = vst [vmem:[%s832 + $0x200] sm:$0xff] %v961
                  %v963 = vld [vmem:[%s831 + $0x410] sm:$0xff]
                  %964 = vst [vmem:[%s832 + $0x208] sm:$0xff] %v963
                  %v965 = vld [vmem:[%s831 + $0x420] sm:$0xff]
                  %966 = vst [vmem:[%s832 + $0x210] sm:$0xff] %v965
                  %v967 = vld [vmem:[%s831 + $0x430] sm:$0xff]
                  %968 = vst [vmem:[%s832 + $0x218] sm:$0xff] %v967
                  %v969 = vld [vmem:[%s831 + $0x440] sm:$0xff]
                  %970 = vst [vmem:[%s832 + $0x220] sm:$0xff] %v969
                  %v971 = vld [vmem:[%s831 + $0x450] sm:$0xff]
                  %972 = vst [vmem:[%s832 + $0x228] sm:$0xff] %v971
                  %v973 = vld [vmem:[%s831 + $0x460] sm:$0xff]
                  %974 = vst [vmem:[%s832 + $0x230] sm:$0xff] %v973
                  %v975 = vld [vmem:[%s831 + $0x470] sm:$0xff]
                  %976 = vst [vmem:[%s832 + $0x238] sm:$0xff] %v975
                  %v977 = vld [vmem:[%s831 + $0x480] sm:$0xff]
                  %978 = vst [vmem:[%s832 + $0x240] sm:$0xff] %v977
                  %v979 = vld [vmem:[%s831 + $0x490] sm:$0xff]
                  %980 = vst [vmem:[%s832 + $0x248] sm:$0xff] %v979
                  %v981 = vld [vmem:[%s831 + $0x4a0] sm:$0xff]
                  %982 = vst [vmem:[%s832 + $0x250] sm:$0xff] %v981
                  %v983 = vld [vmem:[%s831 + $0x4b0] sm:$0xff]
                  %984 = vst [vmem:[%s832 + $0x258] sm:$0xff] %v983
                  %v985 = vld [vmem:[%s831 + $0x4c0] sm:$0xff]
                  %986 = vst [vmem:[%s832 + $0x260] sm:$0xff] %v985
                  %v987 = vld [vmem:[%s831 + $0x4d0] sm:$0xff]
                  %988 = vst [vmem:[%s832 + $0x268] sm:$0xff] %v987
                  %v989 = vld [vmem:[%s831 + $0x4e0] sm:$0xff]
                  %990 = vst [vmem:[%s832 + $0x270] sm:$0xff] %v989
                  %v991 = vld [vmem:[%s831 + $0x4f0] sm:$0xff]
                  %992 = vst [vmem:[%s832 + $0x278] sm:$0xff] %v991
                  %v993 = vld [vmem:[%s831 + $0x500] sm:$0xff]
                  %994 = vst [vmem:[%s832 + $0x280] sm:$0xff] %v993
                  %v995 = vld [vmem:[%s831 + $0x510] sm:$0xff]
                  %996 = vst [vmem:[%s832 + $0x288] sm:$0xff] %v995
                  %v997 = vld [vmem:[%s831 + $0x520] sm:$0xff]
                  %998 = vst [vmem:[%s832 + $0x290] sm:$0xff] %v997
                  %v999 = vld [vmem:[%s831 + $0x530] sm:$0xff]
                  %1000 = vst [vmem:[%s832 + $0x298] sm:$0xff] %v999
                  %v1001 = vld [vmem:[%s831 + $0x540] sm:$0xff]
                  %1002 = vst [vmem:[%s832 + $0x2a0] sm:$0xff] %v1001
                  %v1003 = vld [vmem:[%s831 + $0x550] sm:$0xff]
                  %1004 = vst [vmem:[%s832 + $0x2a8] sm:$0xff] %v1003
                  %v1005 = vld [vmem:[%s831 + $0x560] sm:$0xff]
                  %1006 = vst [vmem:[%s832 + $0x2b0] sm:$0xff] %v1005
                  %v1007 = vld [vmem:[%s831 + $0x570] sm:$0xff]
                  %1008 = vst [vmem:[%s832 + $0x2b8] sm:$0xff] %v1007
                  %v1009 = vld [vmem:[%s831 + $0x580] sm:$0xff]
                  %1010 = vst [vmem:[%s832 + $0x2c0] sm:$0xff] %v1009
                  %v1011 = vld [vmem:[%s831 + $0x590] sm:$0xff]
                  %1012 = vst [vmem:[%s832 + $0x2c8] sm:$0xff] %v1011
                  %v1013 = vld [vmem:[%s831 + $0x5a0] sm:$0xff]
                  %1014 = vst [vmem:[%s832 + $0x2d0] sm:$0xff] %v1013
                  %v1015 = vld [vmem:[%s831 + $0x5b0] sm:$0xff]
                  %1016 = vst [vmem:[%s832 + $0x2d8] sm:$0xff] %v1015
                  %v1017 = vld [vmem:[%s831 + $0x5c0] sm:$0xff]
                  %1018 = vst [vmem:[%s832 + $0x2e0] sm:$0xff] %v1017
                  %v1019 = vld [vmem:[%s831 + $0x5d0] sm:$0xff]
                  %1020 = vst [vmem:[%s832 + $0x2e8] sm:$0xff] %v1019
                  %v1021 = vld [vmem:[%s831 + $0x5e0] sm:$0xff]
                  %1022 = vst [vmem:[%s832 + $0x2f0] sm:$0xff] %v1021
                  %v1023 = vld [vmem:[%s831 + $0x5f0] sm:$0xff]
                  %1024 = vst [vmem:[%s832 + $0x2f8] sm:$0xff] %v1023
                  %v1025 = vld [vmem:[%s831 + $0x600] sm:$0xff]
                  %1026 = vst [vmem:[%s832 + $0x300] sm:$0xff] %v1025
                  %v1027 = vld [vmem:[%s831 + $0x610] sm:$0xff]
                  %1028 = vst [vmem:[%s832 + $0x308] sm:$0xff] %v1027
                  %v1029 = vld [vmem:[%s831 + $0x620] sm:$0xff]
                  %1030 = vst [vmem:[%s832 + $0x310] sm:$0xff] %v1029
                  %v1031 = vld [vmem:[%s831 + $0x630] sm:$0xff]
                  %1032 = vst [vmem:[%s832 + $0x318] sm:$0xff] %v1031
                  %v1033 = vld [vmem:[%s831 + $0x640] sm:$0xff]
                  %1034 = vst [vmem:[%s832 + $0x320] sm:$0xff] %v1033
                  %v1035 = vld [vmem:[%s831 + $0x650] sm:$0xff]
                  %1036 = vst [vmem:[%s832 + $0x328] sm:$0xff] %v1035
                $region86: #{embedding_forward.1} parent=80 // loop_footer
                  %s830 = sadd.s32 1, %s826
                $region87: #{embedding_forward.1} parent=80 // loop_footer_branch
                  %825 = sbr.rel target = $region83
                $region88: #{embedding_forward.1} parent=80 // loop_exit
                  _
              $region81: #{embedding_forward.1} parent=65 // pred_fallthru
                _
              // Predicated region
              $region89: #{embedding_forward.1} parent=65 // pred_check
                _
              $region90: #{embedding_forward.1} parent=65 // pred_check_branch
                %1038 = sbr.rel target = $region92
              $region91: #{embedding_forward.1} parent=65 // pred_region
                _
              $region92: #{embedding_forward.1} parent=65 // pred_fallthru
                _
            $region66: #{embedding_forward.1} parent=61 // pred_fallthru
              _
            // Predicated region
            $region67: #{embedding_forward.1} parent=61 // pred_check
              _
            $region68: #{embedding_forward.1} parent=61 // pred_check_branch
              %609 = sbr.rel target = $region70
            $region69: #{embedding_forward.1} parent=61 // pred_region
              loop: start=0, step=1, limit=1
              $region71: #{embedding_forward.1} parent=69 // loop_pre_header
                _
              $region72: #{embedding_forward.1} parent=69 // loop_header
                %s612 = sphi 0, %s616
                %p613 = scmp.ge.s32.totalorder %s612, 1
                %s617 = sphi %s603, %s603
                %s618 = sphi %s601, %s601
              $region73: #{embedding_forward.1} parent=69 // loop_header_branch
                %615 = sbr.rel (%p613) target = $region77
              $region74: #{embedding_forward.1} parent=69 // loop_body
                %v619 = vld [vmem:[%s617] sm:$0xff]
                %620 = vst [vmem:[%s618] sm:$0xff] %v619
                %v621 = vld [vmem:[%s617 + $0x10] sm:$0xff]
                %622 = vst [vmem:[%s618 + $0x8] sm:$0xff] %v621
                %v623 = vld [vmem:[%s617 + $0x20] sm:$0xff]
                %624 = vst [vmem:[%s618 + $0x10] sm:$0xff] %v623
                %v625 = vld [vmem:[%s617 + $0x30] sm:$0xff]
                %626 = vst [vmem:[%s618 + $0x18] sm:$0xff] %v625
                %v627 = vld [vmem:[%s617 + $0x40] sm:$0xff]
                %628 = vst [vmem:[%s618 + $0x20] sm:$0xff] %v627
                %v629 = vld [vmem:[%s617 + $0x50] sm:$0xff]
                %630 = vst [vmem:[%s618 + $0x28] sm:$0xff] %v629
                %v631 = vld [vmem:[%s617 + $0x60] sm:$0xff]
                %632 = vst [vmem:[%s618 + $0x30] sm:$0xff] %v631
                %v633 = vld [vmem:[%s617 + $0x70] sm:$0xff]
                %634 = vst [vmem:[%s618 + $0x38] sm:$0xff] %v633
                %v635 = vld [vmem:[%s617 + $0x80] sm:$0xff]
                %636 = vst [vmem:[%s618 + $0x40] sm:$0xff] %v635
                %v637 = vld [vmem:[%s617 + $0x90] sm:$0xff]
                %638 = vst [vmem:[%s618 + $0x48] sm:$0xff] %v637
                %v639 = vld [vmem:[%s617 + $0xa0] sm:$0xff]
                %640 = vst [vmem:[%s618 + $0x50] sm:$0xff] %v639
                %v641 = vld [vmem:[%s617 + $0xb0] sm:$0xff]
                %642 = vst [vmem:[%s618 + $0x58] sm:$0xff] %v641
                %v643 = vld [vmem:[%s617 + $0xc0] sm:$0xff]
                %644 = vst [vmem:[%s618 + $0x60] sm:$0xff] %v643
                %v645 = vld [vmem:[%s617 + $0xd0] sm:$0xff]
                %646 = vst [vmem:[%s618 + $0x68] sm:$0xff] %v645
                %v647 = vld [vmem:[%s617 + $0xe0] sm:$0xff]
                %648 = vst [vmem:[%s618 + $0x70] sm:$0xff] %v647
                %v649 = vld [vmem:[%s617 + $0xf0] sm:$0xff]
                %650 = vst [vmem:[%s618 + $0x78] sm:$0xff] %v649
                %v651 = vld [vmem:[%s617 + $0x100] sm:$0xff]
                %652 = vst [vmem:[%s618 + $0x80] sm:$0xff] %v651
                %v653 = vld [vmem:[%s617 + $0x110] sm:$0xff]
                %654 = vst [vmem:[%s618 + $0x88] sm:$0xff] %v653
                %v655 = vld [vmem:[%s617 + $0x120] sm:$0xff]
                %656 = vst [vmem:[%s618 + $0x90] sm:$0xff] %v655
                %v657 = vld [vmem:[%s617 + $0x130] sm:$0xff]
                %658 = vst [vmem:[%s618 + $0x98] sm:$0xff] %v657
                %v659 = vld [vmem:[%s617 + $0x140] sm:$0xff]
                %660 = vst [vmem:[%s618 + $0xa0] sm:$0xff] %v659
                %v661 = vld [vmem:[%s617 + $0x150] sm:$0xff]
                %662 = vst [vmem:[%s618 + $0xa8] sm:$0xff] %v661
                %v663 = vld [vmem:[%s617 + $0x160] sm:$0xff]
                %664 = vst [vmem:[%s618 + $0xb0] sm:$0xff] %v663
                %v665 = vld [vmem:[%s617 + $0x170] sm:$0xff]
                %666 = vst [vmem:[%s618 + $0xb8] sm:$0xff] %v665
                %v667 = vld [vmem:[%s617 + $0x180] sm:$0xff]
                %668 = vst [vmem:[%s618 + $0xc0] sm:$0xff] %v667
                %v669 = vld [vmem:[%s617 + $0x190] sm:$0xff]
                %670 = vst [vmem:[%s618 + $0xc8] sm:$0xff] %v669
                %v671 = vld [vmem:[%s617 + $0x1a0] sm:$0xff]
                %672 = vst [vmem:[%s618 + $0xd0] sm:$0xff] %v671
                %v673 = vld [vmem:[%s617 + $0x1b0] sm:$0xff]
                %674 = vst [vmem:[%s618 + $0xd8] sm:$0xff] %v673
                %v675 = vld [vmem:[%s617 + $0x1c0] sm:$0xff]
                %676 = vst [vmem:[%s618 + $0xe0] sm:$0xff] %v675
                %v677 = vld [vmem:[%s617 + $0x1d0] sm:$0xff]
                %678 = vst [vmem:[%s618 + $0xe8] sm:$0xff] %v677
                %v679 = vld [vmem:[%s617 + $0x1e0] sm:$0xff]
                %680 = vst [vmem:[%s618 + $0xf0] sm:$0xff] %v679
                %v681 = vld [vmem:[%s617 + $0x1f0] sm:$0xff]
                %682 = vst [vmem:[%s618 + $0xf8] sm:$0xff] %v681
                %v683 = vld [vmem:[%s617 + $0x200] sm:$0xff]
                %684 = vst [vmem:[%s618 + $0x100] sm:$0xff] %v683
                %v685 = vld [vmem:[%s617 + $0x210] sm:$0xff]
                %686 = vst [vmem:[%s618 + $0x108] sm:$0xff] %v685
                %v687 = vld [vmem:[%s617 + $0x220] sm:$0xff]
                %688 = vst [vmem:[%s618 + $0x110] sm:$0xff] %v687
                %v689 = vld [vmem:[%s617 + $0x230] sm:$0xff]
                %690 = vst [vmem:[%s618 + $0x118] sm:$0xff] %v689
                %v691 = vld [vmem:[%s617 + $0x240] sm:$0xff]
                %692 = vst [vmem:[%s618 + $0x120] sm:$0xff] %v691
                %v693 = vld [vmem:[%s617 + $0x250] sm:$0xff]
                %694 = vst [vmem:[%s618 + $0x128] sm:$0xff] %v693
                %v695 = vld [vmem:[%s617 + $0x260] sm:$0xff]
                %696 = vst [vmem:[%s618 + $0x130] sm:$0xff] %v695
                %v697 = vld [vmem:[%s617 + $0x270] sm:$0xff]
                %698 = vst [vmem:[%s618 + $0x138] sm:$0xff] %v697
                %v699 = vld [vmem:[%s617 + $0x280] sm:$0xff]
                %700 = vst [vmem:[%s618 + $0x140] sm:$0xff] %v699
                %v701 = vld [vmem:[%s617 + $0x290] sm:$0xff]
                %702 = vst [vmem:[%s618 + $0x148] sm:$0xff] %v701
                %v703 = vld [vmem:[%s617 + $0x2a0] sm:$0xff]
                %704 = vst [vmem:[%s618 + $0x150] sm:$0xff] %v703
                %v705 = vld [vmem:[%s617 + $0x2b0] sm:$0xff]
                %706 = vst [vmem:[%s618 + $0x158] sm:$0xff] %v705
                %v707 = vld [vmem:[%s617 + $0x2c0] sm:$0xff]
                %708 = vst [vmem:[%s618 + $0x160] sm:$0xff] %v707
                %v709 = vld [vmem:[%s617 + $0x2d0] sm:$0xff]
                %710 = vst [vmem:[%s618 + $0x168] sm:$0xff] %v709
                %v711 = vld [vmem:[%s617 + $0x2e0] sm:$0xff]
                %712 = vst [vmem:[%s618 + $0x170] sm:$0xff] %v711
                %v713 = vld [vmem:[%s617 + $0x2f0] sm:$0xff]
                %714 = vst [vmem:[%s618 + $0x178] sm:$0xff] %v713
                %v715 = vld [vmem:[%s617 + $0x300] sm:$0xff]
                %716 = vst [vmem:[%s618 + $0x180] sm:$0xff] %v715
                %v717 = vld [vmem:[%s617 + $0x310] sm:$0xff]
                %718 = vst [vmem:[%s618 + $0x188] sm:$0xff] %v717
                %v719 = vld [vmem:[%s617 + $0x320] sm:$0xff]
                %720 = vst [vmem:[%s618 + $0x190] sm:$0xff] %v719
                %v721 = vld [vmem:[%s617 + $0x330] sm:$0xff]
                %722 = vst [vmem:[%s618 + $0x198] sm:$0xff] %v721
                %v723 = vld [vmem:[%s617 + $0x340] sm:$0xff]
                %724 = vst [vmem:[%s618 + $0x1a0] sm:$0xff] %v723
                %v725 = vld [vmem:[%s617 + $0x350] sm:$0xff]
                %726 = vst [vmem:[%s618 + $0x1a8] sm:$0xff] %v725
                %v727 = vld [vmem:[%s617 + $0x360] sm:$0xff]
                %728 = vst [vmem:[%s618 + $0x1b0] sm:$0xff] %v727
                %v729 = vld [vmem:[%s617 + $0x370] sm:$0xff]
                %730 = vst [vmem:[%s618 + $0x1b8] sm:$0xff] %v729
                %v731 = vld [vmem:[%s617 + $0x380] sm:$0xff]
                %732 = vst [vmem:[%s618 + $0x1c0] sm:$0xff] %v731
                %v733 = vld [vmem:[%s617 + $0x390] sm:$0xff]
                %734 = vst [vmem:[%s618 + $0x1c8] sm:$0xff] %v733
                %v735 = vld [vmem:[%s617 + $0x3a0] sm:$0xff]
                %736 = vst [vmem:[%s618 + $0x1d0] sm:$0xff] %v735
                %v737 = vld [vmem:[%s617 + $0x3b0] sm:$0xff]
                %738 = vst [vmem:[%s618 + $0x1d8] sm:$0xff] %v737
                %v739 = vld [vmem:[%s617 + $0x3c0] sm:$0xff]
                %740 = vst [vmem:[%s618 + $0x1e0] sm:$0xff] %v739
                %v741 = vld [vmem:[%s617 + $0x3d0] sm:$0xff]
                %742 = vst [vmem:[%s618 + $0x1e8] sm:$0xff] %v741
                %v743 = vld [vmem:[%s617 + $0x3e0] sm:$0xff]
                %744 = vst [vmem:[%s618 + $0x1f0] sm:$0xff] %v743
                %v745 = vld [vmem:[%s617 + $0x3f0] sm:$0xff]
                %746 = vst [vmem:[%s618 + $0x1f8] sm:$0xff] %v745
                %v747 = vld [vmem:[%s617 + $0x400] sm:$0xff]
                %748 = vst [vmem:[%s618 + $0x200] sm:$0xff] %v747
                %v749 = vld [vmem:[%s617 + $0x410] sm:$0xff]
                %750 = vst [vmem:[%s618 + $0x208] sm:$0xff] %v749
                %v751 = vld [vmem:[%s617 + $0x420] sm:$0xff]
                %752 = vst [vmem:[%s618 + $0x210] sm:$0xff] %v751
                %v753 = vld [vmem:[%s617 + $0x430] sm:$0xff]
                %754 = vst [vmem:[%s618 + $0x218] sm:$0xff] %v753
                %v755 = vld [vmem:[%s617 + $0x440] sm:$0xff]
                %756 = vst [vmem:[%s618 + $0x220] sm:$0xff] %v755
                %v757 = vld [vmem:[%s617 + $0x450] sm:$0xff]
                %758 = vst [vmem:[%s618 + $0x228] sm:$0xff] %v757
                %v759 = vld [vmem:[%s617 + $0x460] sm:$0xff]
                %760 = vst [vmem:[%s618 + $0x230] sm:$0xff] %v759
                %v761 = vld [vmem:[%s617 + $0x470] sm:$0xff]
                %762 = vst [vmem:[%s618 + $0x238] sm:$0xff] %v761
                %v763 = vld [vmem:[%s617 + $0x480] sm:$0xff]
                %764 = vst [vmem:[%s618 + $0x240] sm:$0xff] %v763
                %v765 = vld [vmem:[%s617 + $0x490] sm:$0xff]
                %766 = vst [vmem:[%s618 + $0x248] sm:$0xff] %v765
                %v767 = vld [vmem:[%s617 + $0x4a0] sm:$0xff]
                %768 = vst [vmem:[%s618 + $0x250] sm:$0xff] %v767
                %v769 = vld [vmem:[%s617 + $0x4b0] sm:$0xff]
                %770 = vst [vmem:[%s618 + $0x258] sm:$0xff] %v769
                %v771 = vld [vmem:[%s617 + $0x4c0] sm:$0xff]
                %772 = vst [vmem:[%s618 + $0x260] sm:$0xff] %v771
                %v773 = vld [vmem:[%s617 + $0x4d0] sm:$0xff]
                %774 = vst [vmem:[%s618 + $0x268] sm:$0xff] %v773
                %v775 = vld [vmem:[%s617 + $0x4e0] sm:$0xff]
                %776 = vst [vmem:[%s618 + $0x270] sm:$0xff] %v775
                %v777 = vld [vmem:[%s617 + $0x4f0] sm:$0xff]
                %778 = vst [vmem:[%s618 + $0x278] sm:$0xff] %v777
                %v779 = vld [vmem:[%s617 + $0x500] sm:$0xff]
                %780 = vst [vmem:[%s618 + $0x280] sm:$0xff] %v779
                %v781 = vld [vmem:[%s617 + $0x510] sm:$0xff]
                %782 = vst [vmem:[%s618 + $0x288] sm:$0xff] %v781
                %v783 = vld [vmem:[%s617 + $0x520] sm:$0xff]
                %784 = vst [vmem:[%s618 + $0x290] sm:$0xff] %v783
                %v785 = vld [vmem:[%s617 + $0x530] sm:$0xff]
                %786 = vst [vmem:[%s618 + $0x298] sm:$0xff] %v785
                %v787 = vld [vmem:[%s617 + $0x540] sm:$0xff]
                %788 = vst [vmem:[%s618 + $0x2a0] sm:$0xff] %v787
                %v789 = vld [vmem:[%s617 + $0x550] sm:$0xff]
                %790 = vst [vmem:[%s618 + $0x2a8] sm:$0xff] %v789
                %v791 = vld [vmem:[%s617 + $0x560] sm:$0xff]
                %792 = vst [vmem:[%s618 + $0x2b0] sm:$0xff] %v791
                %v793 = vld [vmem:[%s617 + $0x570] sm:$0xff]
                %794 = vst [vmem:[%s618 + $0x2b8] sm:$0xff] %v793
                %v795 = vld [vmem:[%s617 + $0x580] sm:$0xff]
                %796 = vst [vmem:[%s618 + $0x2c0] sm:$0xff] %v795
                %v797 = vld [vmem:[%s617 + $0x590] sm:$0xff]
                %798 = vst [vmem:[%s618 + $0x2c8] sm:$0xff] %v797
                %v799 = vld [vmem:[%s617 + $0x5a0] sm:$0xff]
                %800 = vst [vmem:[%s618 + $0x2d0] sm:$0xff] %v799
                %v801 = vld [vmem:[%s617 + $0x5b0] sm:$0xff]
                %802 = vst [vmem:[%s618 + $0x2d8] sm:$0xff] %v801
                %v803 = vld [vmem:[%s617 + $0x5c0] sm:$0xff]
                %804 = vst [vmem:[%s618 + $0x2e0] sm:$0xff] %v803
                %v805 = vld [vmem:[%s617 + $0x5d0] sm:$0xff]
                %806 = vst [vmem:[%s618 + $0x2e8] sm:$0xff] %v805
                %v807 = vld [vmem:[%s617 + $0x5e0] sm:$0xff]
                %808 = vst [vmem:[%s618 + $0x2f0] sm:$0xff] %v807
                %v809 = vld [vmem:[%s617 + $0x5f0] sm:$0xff]
                %810 = vst [vmem:[%s618 + $0x2f8] sm:$0xff] %v809
                %v811 = vld [vmem:[%s617 + $0x600] sm:$0xff]
                %812 = vst [vmem:[%s618 + $0x300] sm:$0xff] %v811
                %v813 = vld [vmem:[%s617 + $0x610] sm:$0xff]
                %814 = vst [vmem:[%s618 + $0x308] sm:$0xff] %v813
                %v815 = vld [vmem:[%s617 + $0x620] sm:$0xff]
                %816 = vst [vmem:[%s618 + $0x310] sm:$0xff] %v815
                %v817 = vld [vmem:[%s617 + $0x630] sm:$0xff]
                %818 = vst [vmem:[%s618 + $0x318] sm:$0xff] %v817
                %v819 = vld [vmem:[%s617 + $0x640] sm:$0xff]
                %820 = vst [vmem:[%s618 + $0x320] sm:$0xff] %v819
                %v821 = vld [vmem:[%s617 + $0x650] sm:$0xff]
                %822 = vst [vmem:[%s618 + $0x328] sm:$0xff] %v821
              $region75: #{embedding_forward.1} parent=69 // loop_footer
                %s616 = sadd.s32 1, %s612
              $region76: #{embedding_forward.1} parent=69 // loop_footer_branch
                %611 = sbr.rel target = $region72
              $region77: #{embedding_forward.1} parent=69 // loop_exit
                _
            $region70: #{embedding_forward.1} parent=61 // pred_fallthru
              _
          $region62: #{embedding_forward.1} parent=57 // pred_fallthru
            _
          %1039 = vnop
        $region58: #{embedding_forward.1} parent=15 // pred_fallthru
          _
        // Predicated region
        $region93: #{embedding_forward.1} parent=15 // pred_check
          %p1040 = pneg %p95
        $region94: #{embedding_forward.1} parent=15 // pred_check_branch
          %1042 = sbr.rel (%p1040) target = $region96
        $region95: #{embedding_forward.1} parent=15 // pred_region
          %p1043 = scmp.lt.s32.totalorder %s17, 1
          %s1044 = scalar_select %p1043, %s17, 1
          %s1045 = scalar_lea.vmem %s2, %s1044
        $region96: #{embedding_forward.1} parent=15 // pred_fallthru
          _
      $region16: #{embedding_forward.1} parent=5 // pred_fallthru
        _
      %p1046 = scmp.le.s32.totalorder 1, %s9
      %p1047 = scmp.lt.s32.totalorder %s9, 5
      %p1048 = pnand %p1046, %p1047
      %p1049 = pneg %p1048
      // Predicated region
      $region97: #{embedding_forward.1} parent=5 // pred_check
        _
      $region98: #{embedding_forward.1} parent=5 // pred_check_branch
        %1051 = sbr.rel (%p1048) target = $region100
      $region99: #{embedding_forward.1} parent=5 // pred_region
        %s1052 = ssub.s32 %s9, 1
        %s1053 = sand.u32 %s36, 1
        %s1054 = sand.u32 %s36, 1
        %s1055 = smul.addr %s1054, 816
        %s1056 = scalar_lea.vmem [#allocation2], %s1055
        // Predicated region
        $region101: #{embedding_forward.1} parent=99 // pred_check
          %p1057 = pneg %p49
        $region102: #{embedding_forward.1} parent=99 // pred_check_branch
          %1059 = sbr.rel (%p1057) target = $region104
        $region103: #{embedding_forward.1} parent=99 // pred_region
          _
        $region104: #{embedding_forward.1} parent=99 // pred_fallthru
          _
        %s1060 = sand.u32 %s62, 1
        %s1061 = sand.u32 %s62, 1
        %s1062 = smul.addr %s1061, 816
        %s1063 = scalar_lea.vmem [#allocation3], %s1062
        // Predicated region
        $region105: #{embedding_forward.1} parent=99 // pred_check
          %p1064 = pneg %p75
        $region106: #{embedding_forward.1} parent=99 // pred_check_branch
          %1066 = sbr.rel (%p1064) target = $region108
        $region107: #{embedding_forward.1} parent=99 // pred_region
          _
        $region108: #{embedding_forward.1} parent=99 // pred_fallthru
          _
        %s1067 = sand.u32 %s36, 1
        %s1068 = sand.u32 %s36, 1
        %s1069 = smul.addr %s1068, 816
        %s1070 = scalar_lea.vmem [#allocation2], %s1069
        %p1071 = pneg %p49
        %p1072 = pneg %p46
        %s1073 = sand.u32 %s62, 1
        %s1074 = sand.u32 %s62, 1
        %s1075 = smul.addr %s1074, 816
        %s1076 = scalar_lea.vmem [#allocation3], %s1075
        %p1077 = pneg %p75
        %p1078 = pneg %p72
        %p1079 = scmp.lt.s32.totalorder %s19, 1
        %s1080 = scalar_select %p1079, %s19, 1
        %s1081 = scalar_lea.vmem %s2, %s1080
        %p1082 = pneg %p101
        %p1083 = pneg %p98
        %p1084 = pneg %p129
        %p1085 = pneg %p126
        %s1086 = sand.u32 %s116, 1
        %s1087 = sand.u32 %s116, 1
        %s1088 = smul.addr %s1087, 816
        %s1089 = scalar_lea.vmem [#allocation4], %s1088
        %p1090 = scmp.lt.s32.totalorder %s19, 1
        %s1091 = scalar_select %p1090, %s19, 1
        %s1092 = scalar_lea.vmem %s2, %s1091
        %v1093 = vld [vmem:[%s1092] sm:$0x1]
        %1094 = vst [vmem:[%s1089] sm:$0x1] %v1093
        %v1095 = vld [vmem:[%s1056] sm:$0xff]
        %v1096 = vld [vmem:[%s1056 + $0x8] sm:$0xff]
        %v1097 = vld [vmem:[%s1056 + $0x10] sm:$0xff]
        %v1098 = vld [vmem:[%s1056 + $0x18] sm:$0xff]
        %v1099 = vld [vmem:[%s1056 + $0x20] sm:$0xff]
        %v1100 = vld [vmem:[%s1056 + $0x28] sm:$0xff]
        %v1101 = vld [vmem:[%s1056 + $0x30] sm:$0xff]
        %v1102 = vld [vmem:[%s1056 + $0x38] sm:$0xff]
        %v1103 = vld [vmem:[%s1056 + $0x40] sm:$0xff]
        %v1104 = vld [vmem:[%s1056 + $0x48] sm:$0xff]
        %v1105 = vld [vmem:[%s1056 + $0x50] sm:$0xff]
        %v1106 = vld [vmem:[%s1056 + $0x58] sm:$0xff]
        %v1107 = vld [vmem:[%s1056 + $0x60] sm:$0xff]
        %v1108 = vld [vmem:[%s1056 + $0x68] sm:$0xff]
        %v1109 = vld [vmem:[%s1056 + $0x70] sm:$0xff]
        %v1110 = vld [vmem:[%s1056 + $0x78] sm:$0xff]
        %v1111 = vld [vmem:[%s1056 + $0x80] sm:$0xff]
        %v1112 = vld [vmem:[%s1056 + $0x88] sm:$0xff]
        %v1113 = vld [vmem:[%s1056 + $0x90] sm:$0xff]
        %v1114 = vld [vmem:[%s1056 + $0x98] sm:$0xff]
        %v1115 = vld [vmem:[%s1056 + $0xa0] sm:$0xff]
        %v1116 = vld [vmem:[%s1056 + $0xa8] sm:$0xff]
        %v1117 = vld [vmem:[%s1056 + $0xb0] sm:$0xff]
        %v1118 = vld [vmem:[%s1056 + $0xb8] sm:$0xff]
        %v1119 = vld [vmem:[%s1056 + $0xc0] sm:$0xff]
        %v1120 = vld [vmem:[%s1056 + $0xc8] sm:$0xff]
        %v1121 = vld [vmem:[%s1056 + $0xd0] sm:$0xff]
        %v1122 = vld [vmem:[%s1056 + $0xd8] sm:$0xff]
        %v1123 = vld [vmem:[%s1056 + $0xe0] sm:$0xff]
        %v1124 = vld [vmem:[%s1056 + $0xe8] sm:$0xff]
        %v1125 = vld [vmem:[%s1056 + $0xf0] sm:$0xff]
        %v1126 = vld [vmem:[%s1056 + $0xf8] sm:$0xff]
        %v1127 = vld [vmem:[%s1056 + $0x100] sm:$0xff]
        %v1128 = vld [vmem:[%s1056 + $0x108] sm:$0xff]
        %v1129 = vld [vmem:[%s1056 + $0x110] sm:$0xff]
        %v1130 = vld [vmem:[%s1056 + $0x118] sm:$0xff]
        %v1131 = vld [vmem:[%s1056 + $0x120] sm:$0xff]
        %v1132 = vld [vmem:[%s1056 + $0x128] sm:$0xff]
        %v1133 = vld [vmem:[%s1056 + $0x130] sm:$0xff]
        %v1134 = vld [vmem:[%s1056 + $0x138] sm:$0xff]
        %v1135 = vld [vmem:[%s1056 + $0x140] sm:$0xff]
        %v1136 = vld [vmem:[%s1056 + $0x148] sm:$0xff]
        %v1137 = vld [vmem:[%s1056 + $0x150] sm:$0xff]
        %v1138 = vld [vmem:[%s1056 + $0x158] sm:$0xff]
        %v1139 = vld [vmem:[%s1056 + $0x160] sm:$0xff]
        %v1140 = vld [vmem:[%s1056 + $0x168] sm:$0xff]
        %v1141 = vld [vmem:[%s1056 + $0x170] sm:$0xff]
        %v1142 = vld [vmem:[%s1056 + $0x178] sm:$0xff]
        %v1143 = vld [vmem:[%s1056 + $0x180] sm:$0xff]
        %v1144 = vld [vmem:[%s1056 + $0x188] sm:$0xff]
        %v1145 = vld [vmem:[%s1056 + $0x190] sm:$0xff]
        %v1146 = vld [vmem:[%s1056 + $0x198] sm:$0xff]
        %v1147 = vld [vmem:[%s1056 + $0x1a0] sm:$0xff]
        %v1148 = vld [vmem:[%s1056 + $0x1a8] sm:$0xff]
        %v1149 = vld [vmem:[%s1056 + $0x1b0] sm:$0xff]
        %v1150 = vld [vmem:[%s1056 + $0x1b8] sm:$0xff]
        %v1151 = vld [vmem:[%s1056 + $0x1c0] sm:$0xff]
        %v1152 = vld [vmem:[%s1056 + $0x1c8] sm:$0xff]
        %v1153 = vld [vmem:[%s1056 + $0x1d0] sm:$0xff]
        %v1154 = vld [vmem:[%s1056 + $0x1d8] sm:$0xff]
        %v1155 = vld [vmem:[%s1056 + $0x1e0] sm:$0xff]
        %v1156 = vld [vmem:[%s1056 + $0x1e8] sm:$0xff]
        %v1157 = vld [vmem:[%s1056 + $0x1f0] sm:$0xff]
        %v1158 = vld [vmem:[%s1056 + $0x1f8] sm:$0xff]
        %v1159 = vld [vmem:[%s1056 + $0x200] sm:$0xff]
        %v1160 = vld [vmem:[%s1056 + $0x208] sm:$0xff]
        %v1161 = vld [vmem:[%s1056 + $0x210] sm:$0xff]
        %v1162 = vld [vmem:[%s1056 + $0x218] sm:$0xff]
        %v1163 = vld [vmem:[%s1056 + $0x220] sm:$0xff]
        %v1164 = vld [vmem:[%s1056 + $0x228] sm:$0xff]
        %v1165 = vld [vmem:[%s1056 + $0x230] sm:$0xff]
        %v1166 = vld [vmem:[%s1056 + $0x238] sm:$0xff]
        %v1167 = vld [vmem:[%s1056 + $0x240] sm:$0xff]
        %v1168 = vld [vmem:[%s1056 + $0x248] sm:$0xff]
        %v1169 = vld [vmem:[%s1056 + $0x250] sm:$0xff]
        %v1170 = vld [vmem:[%s1056 + $0x258] sm:$0xff]
        %v1171 = vld [vmem:[%s1056 + $0x260] sm:$0xff]
        %v1172 = vld [vmem:[%s1056 + $0x268] sm:$0xff]
        %v1173 = vld [vmem:[%s1056 + $0x270] sm:$0xff]
        %v1174 = vld [vmem:[%s1056 + $0x278] sm:$0xff]
        %v1175 = vld [vmem:[%s1056 + $0x280] sm:$0xff]
        %v1176 = vld [vmem:[%s1056 + $0x288] sm:$0xff]
        %v1177 = vld [vmem:[%s1056 + $0x290] sm:$0xff]
        %v1178 = vld [vmem:[%s1056 + $0x298] sm:$0xff]
        %v1179 = vld [vmem:[%s1056 + $0x2a0] sm:$0xff]
        %v1180 = vld [vmem:[%s1056 + $0x2a8] sm:$0xff]
        %v1181 = vld [vmem:[%s1056 + $0x2b0] sm:$0xff]
        %v1182 = vld [vmem:[%s1056 + $0x2b8] sm:$0xff]
        %v1183 = vld [vmem:[%s1056 + $0x2c0] sm:$0xff]
        %v1184 = vld [vmem:[%s1056 + $0x2c8] sm:$0xff]
        %v1185 = vld [vmem:[%s1056 + $0x2d0] sm:$0xff]
        %v1186 = vld [vmem:[%s1056 + $0x2d8] sm:$0xff]
        %v1187 = vld [vmem:[%s1056 + $0x2e0] sm:$0xff]
        %v1188 = vld [vmem:[%s1056 + $0x2e8] sm:$0xff]
        %v1189 = vld [vmem:[%s1056 + $0x2f0] sm:$0xff]
        %v1190 = vld [vmem:[%s1056 + $0x2f8] sm:$0xff]
        %v1191 = vld [vmem:[%s1056 + $0x300] sm:$0xff]
        %v1192 = vld [vmem:[%s1056 + $0x308] sm:$0xff]
        %v1193 = vld [vmem:[%s1056 + $0x310] sm:$0xff]
        %v1194 = vld [vmem:[%s1056 + $0x318] sm:$0xff]
        %v1195 = vld [vmem:[%s1056 + $0x320] sm:$0xff]
        %v1196 = vld [vmem:[%s1056 + $0x328] sm:$0x3]
        %v1197 = vld [vmem:[%s1063] sm:$0xff]
        %v1198 = vld [vmem:[%s1063 + $0x8] sm:$0xff]
        %v1199 = vld [vmem:[%s1063 + $0x10] sm:$0xff]
        %v1200 = vld [vmem:[%s1063 + $0x18] sm:$0xff]
        %v1201 = vld [vmem:[%s1063 + $0x20] sm:$0xff]
        %v1202 = vld [vmem:[%s1063 + $0x28] sm:$0xff]
        %v1203 = vld [vmem:[%s1063 + $0x30] sm:$0xff]
        %v1204 = vld [vmem:[%s1063 + $0x38] sm:$0xff]
        %v1205 = vld [vmem:[%s1063 + $0x40] sm:$0xff]
        %v1206 = vld [vmem:[%s1063 + $0x48] sm:$0xff]
        %v1207 = vld [vmem:[%s1063 + $0x50] sm:$0xff]
        %v1208 = vld [vmem:[%s1063 + $0x58] sm:$0xff]
        %v1209 = vld [vmem:[%s1063 + $0x60] sm:$0xff]
        %v1210 = vld [vmem:[%s1063 + $0x68] sm:$0xff]
        %v1211 = vld [vmem:[%s1063 + $0x70] sm:$0xff]
        %v1212 = vld [vmem:[%s1063 + $0x78] sm:$0xff]
        %v1213 = vld [vmem:[%s1063 + $0x80] sm:$0xff]
        %v1214 = vld [vmem:[%s1063 + $0x88] sm:$0xff]
        %v1215 = vld [vmem:[%s1063 + $0x90] sm:$0xff]
        %v1216 = vld [vmem:[%s1063 + $0x98] sm:$0xff]
        %v1217 = vld [vmem:[%s1063 + $0xa0] sm:$0xff]
        %v1218 = vld [vmem:[%s1063 + $0xa8] sm:$0xff]
        %v1219 = vld [vmem:[%s1063 + $0xb0] sm:$0xff]
        %v1220 = vld [vmem:[%s1063 + $0xb8] sm:$0xff]
        %v1221 = vld [vmem:[%s1063 + $0xc0] sm:$0xff]
        %v1222 = vld [vmem:[%s1063 + $0xc8] sm:$0xff]
        %v1223 = vld [vmem:[%s1063 + $0xd0] sm:$0xff]
        %v1224 = vld [vmem:[%s1063 + $0xd8] sm:$0xff]
        %v1225 = vld [vmem:[%s1063 + $0xe0] sm:$0xff]
        %v1226 = vld [vmem:[%s1063 + $0xe8] sm:$0xff]
        %v1227 = vld [vmem:[%s1063 + $0xf0] sm:$0xff]
        %v1228 = vld [vmem:[%s1063 + $0xf8] sm:$0xff]
        %v1229 = vld [vmem:[%s1063 + $0x100] sm:$0xff]
        %v1230 = vld [vmem:[%s1063 + $0x108] sm:$0xff]
        %v1231 = vld [vmem:[%s1063 + $0x110] sm:$0xff]
        %v1232 = vld [vmem:[%s1063 + $0x118] sm:$0xff]
        %v1233 = vld [vmem:[%s1063 + $0x120] sm:$0xff]
        %v1234 = vld [vmem:[%s1063 + $0x128] sm:$0xff]
        %v1235 = vld [vmem:[%s1063 + $0x130] sm:$0xff]
        %v1236 = vld [vmem:[%s1063 + $0x138] sm:$0xff]
        %v1237 = vld [vmem:[%s1063 + $0x140] sm:$0xff]
        %v1238 = vld [vmem:[%s1063 + $0x148] sm:$0xff]
        %v1239 = vld [vmem:[%s1063 + $0x150] sm:$0xff]
        %v1240 = vld [vmem:[%s1063 + $0x158] sm:$0xff]
        %v1241 = vld [vmem:[%s1063 + $0x160] sm:$0xff]
        %v1242 = vld [vmem:[%s1063 + $0x168] sm:$0xff]
        %v1243 = vld [vmem:[%s1063 + $0x170] sm:$0xff]
        %v1244 = vld [vmem:[%s1063 + $0x178] sm:$0xff]
        %v1245 = vld [vmem:[%s1063 + $0x180] sm:$0xff]
        %v1246 = vld [vmem:[%s1063 + $0x188] sm:$0xff]
        %v1247 = vld [vmem:[%s1063 + $0x190] sm:$0xff]
        %v1248 = vld [vmem:[%s1063 + $0x198] sm:$0xff]
        %v1249 = vld [vmem:[%s1063 + $0x1a0] sm:$0xff]
        %v1250 = vld [vmem:[%s1063 + $0x1a8] sm:$0xff]
        %v1251 = vld [vmem:[%s1063 + $0x1b0] sm:$0xff]
        %v1252 = vld [vmem:[%s1063 + $0x1b8] sm:$0xff]
        %v1253 = vld [vmem:[%s1063 + $0x1c0] sm:$0xff]
        %v1254 = vld [vmem:[%s1063 + $0x1c8] sm:$0xff]
        %v1255 = vld [vmem:[%s1063 + $0x1d0] sm:$0xff]
        %v1256 = vld [vmem:[%s1063 + $0x1d8] sm:$0xff]
        %v1257 = vld [vmem:[%s1063 + $0x1e0] sm:$0xff]
        %v1258 = vld [vmem:[%s1063 + $0x1e8] sm:$0xff]
        %v1259 = vld [vmem:[%s1063 + $0x1f0] sm:$0xff]
        %v1260 = vld [vmem:[%s1063 + $0x1f8] sm:$0xff]
        %v1261 = vld [vmem:[%s1063 + $0x200] sm:$0xff]
        %v1262 = vld [vmem:[%s1063 + $0x208] sm:$0xff]
        %v1263 = vld [vmem:[%s1063 + $0x210] sm:$0xff]
        %v1264 = vld [vmem:[%s1063 + $0x218] sm:$0xff]
        %v1265 = vld [vmem:[%s1063 + $0x220] sm:$0xff]
        %v1266 = vld [vmem:[%s1063 + $0x228] sm:$0xff]
        %v1267 = vld [vmem:[%s1063 + $0x230] sm:$0xff]
        %v1268 = vld [vmem:[%s1063 + $0x238] sm:$0xff]
        %v1269 = vld [vmem:[%s1063 + $0x240] sm:$0xff]
        %v1270 = vld [vmem:[%s1063 + $0x248] sm:$0xff]
        %v1271 = vld [vmem:[%s1063 + $0x250] sm:$0xff]
        %v1272 = vld [vmem:[%s1063 + $0x258] sm:$0xff]
        %v1273 = vld [vmem:[%s1063 + $0x260] sm:$0xff]
        %v1274 = vld [vmem:[%s1063 + $0x268] sm:$0xff]
        %v1275 = vld [vmem:[%s1063 + $0x270] sm:$0xff]
        %v1276 = vld [vmem:[%s1063 + $0x278] sm:$0xff]
        %v1277 = vld [vmem:[%s1063 + $0x280] sm:$0xff]
        %v1278 = vld [vmem:[%s1063 + $0x288] sm:$0xff]
        %v1279 = vld [vmem:[%s1063 + $0x290] sm:$0xff]
        %v1280 = vld [vmem:[%s1063 + $0x298] sm:$0xff]
        %v1281 = vld [vmem:[%s1063 + $0x2a0] sm:$0xff]
        %v1282 = vld [vmem:[%s1063 + $0x2a8] sm:$0xff]
        %v1283 = vld [vmem:[%s1063 + $0x2b0] sm:$0xff]
        %v1284 = vld [vmem:[%s1063 + $0x2b8] sm:$0xff]
        %v1285 = vld [vmem:[%s1063 + $0x2c0] sm:$0xff]
        %v1286 = vld [vmem:[%s1063 + $0x2c8] sm:$0xff]
        %v1287 = vld [vmem:[%s1063 + $0x2d0] sm:$0xff]
        %v1288 = vld [vmem:[%s1063 + $0x2d8] sm:$0xff]
        %v1289 = vld [vmem:[%s1063 + $0x2e0] sm:$0xff]
        %v1290 = vld [vmem:[%s1063 + $0x2e8] sm:$0xff]
        %v1291 = vld [vmem:[%s1063 + $0x2f0] sm:$0xff]
        %v1292 = vld [vmem:[%s1063 + $0x2f8] sm:$0xff]
        %v1293 = vld [vmem:[%s1063 + $0x300] sm:$0xff]
        %v1294 = vld [vmem:[%s1063 + $0x308] sm:$0xff]
        %v1295 = vld [vmem:[%s1063 + $0x310] sm:$0xff]
        %v1296 = vld [vmem:[%s1063 + $0x318] sm:$0xff]
        %v1297 = vld [vmem:[%s1063 + $0x320] sm:$0xff]
        %v1298 = vld [vmem:[%s1063 + $0x328] sm:$0x3]
        %v1299 = vadd.f32 %v1095, %v1197
        %v1300 = vadd.f32 %v1096, %v1198
        %v1301 = vadd.f32 %v1097, %v1199
        %v1302 = vadd.f32 %v1098, %v1200
        %v1303 = vadd.f32 %v1099, %v1201
        %v1304 = vadd.f32 %v1100, %v1202
        %v1305 = vadd.f32 %v1101, %v1203
        %v1306 = vadd.f32 %v1102, %v1204
        %v1307 = vadd.f32 %v1103, %v1205
        %v1308 = vadd.f32 %v1104, %v1206
        %v1309 = vadd.f32 %v1105, %v1207
        %v1310 = vadd.f32 %v1106, %v1208
        %v1311 = vadd.f32 %v1107, %v1209
        %v1312 = vadd.f32 %v1108, %v1210
        %v1313 = vadd.f32 %v1109, %v1211
        %v1314 = vadd.f32 %v1110, %v1212
        %v1315 = vadd.f32 %v1111, %v1213
        %v1316 = vadd.f32 %v1112, %v1214
        %v1317 = vadd.f32 %v1113, %v1215
        %v1318 = vadd.f32 %v1114, %v1216
        %v1319 = vadd.f32 %v1115, %v1217
        %v1320 = vadd.f32 %v1116, %v1218
        %v1321 = vadd.f32 %v1117, %v1219
        %v1322 = vadd.f32 %v1118, %v1220
        %v1323 = vadd.f32 %v1119, %v1221
        %v1324 = vadd.f32 %v1120, %v1222
        %v1325 = vadd.f32 %v1121, %v1223
        %v1326 = vadd.f32 %v1122, %v1224
        %v1327 = vadd.f32 %v1123, %v1225
        %v1328 = vadd.f32 %v1124, %v1226
        %v1329 = vadd.f32 %v1125, %v1227
        %v1330 = vadd.f32 %v1126, %v1228
        %v1331 = vadd.f32 %v1127, %v1229
        %v1332 = vadd.f32 %v1128, %v1230
        %v1333 = vadd.f32 %v1129, %v1231
        %v1334 = vadd.f32 %v1130, %v1232
        %v1335 = vadd.f32 %v1131, %v1233
        %v1336 = vadd.f32 %v1132, %v1234
        %v1337 = vadd.f32 %v1133, %v1235
        %v1338 = vadd.f32 %v1134, %v1236
        %v1339 = vadd.f32 %v1135, %v1237
        %v1340 = vadd.f32 %v1136, %v1238
        %v1341 = vadd.f32 %v1137, %v1239
        %v1342 = vadd.f32 %v1138, %v1240
        %v1343 = vadd.f32 %v1139, %v1241
        %v1344 = vadd.f32 %v1140, %v1242
        %v1345 = vadd.f32 %v1141, %v1243
        %v1346 = vadd.f32 %v1142, %v1244
        %v1347 = vadd.f32 %v1143, %v1245
        %v1348 = vadd.f32 %v1144, %v1246
        %v1349 = vadd.f32 %v1145, %v1247
        %v1350 = vadd.f32 %v1146, %v1248
        %v1351 = vadd.f32 %v1147, %v1249
        %v1352 = vadd.f32 %v1148, %v1250
        %v1353 = vadd.f32 %v1149, %v1251
        %v1354 = vadd.f32 %v1150, %v1252
        %v1355 = vadd.f32 %v1151, %v1253
        %v1356 = vadd.f32 %v1152, %v1254
        %v1357 = vadd.f32 %v1153, %v1255
        %v1358 = vadd.f32 %v1154, %v1256
        %v1359 = vadd.f32 %v1155, %v1257
        %v1360 = vadd.f32 %v1156, %v1258
        %v1361 = vadd.f32 %v1157, %v1259
        %v1362 = vadd.f32 %v1158, %v1260
        %v1363 = vadd.f32 %v1159, %v1261
        %v1364 = vadd.f32 %v1160, %v1262
        %v1365 = vadd.f32 %v1161, %v1263
        %v1366 = vadd.f32 %v1162, %v1264
        %v1367 = vadd.f32 %v1163, %v1265
        %v1368 = vadd.f32 %v1164, %v1266
        %v1369 = vadd.f32 %v1165, %v1267
        %v1370 = vadd.f32 %v1166, %v1268
        %v1371 = vadd.f32 %v1167, %v1269
        %v1372 = vadd.f32 %v1168, %v1270
        %v1373 = vadd.f32 %v1169, %v1271
        %v1374 = vadd.f32 %v1170, %v1272
        %v1375 = vadd.f32 %v1171, %v1273
        %v1376 = vadd.f32 %v1172, %v1274
        %v1377 = vadd.f32 %v1173, %v1275
        %v1378 = vadd.f32 %v1174, %v1276
        %v1379 = vadd.f32 %v1175, %v1277
        %v1380 = vadd.f32 %v1176, %v1278
        %v1381 = vadd.f32 %v1177, %v1279
        %v1382 = vadd.f32 %v1178, %v1280
        %v1383 = vadd.f32 %v1179, %v1281
        %v1384 = vadd.f32 %v1180, %v1282
        %v1385 = vadd.f32 %v1181, %v1283
        %v1386 = vadd.f32 %v1182, %v1284
        %v1387 = vadd.f32 %v1183, %v1285
        %v1388 = vadd.f32 %v1184, %v1286
        %v1389 = vadd.f32 %v1185, %v1287
        %v1390 = vadd.f32 %v1186, %v1288
        %v1391 = vadd.f32 %v1187, %v1289
        %v1392 = vadd.f32 %v1188, %v1290
        %v1393 = vadd.f32 %v1189, %v1291
        %v1394 = vadd.f32 %v1190, %v1292
        %v1395 = vadd.f32 %v1191, %v1293
        %v1396 = vadd.f32 %v1192, %v1294
        %v1397 = vadd.f32 %v1193, %v1295
        %v1398 = vadd.f32 %v1194, %v1296
        %v1399 = vadd.f32 %v1195, %v1297
        %v1400 = vadd.f32 %v1196, %v1298
        %1401 = vst [vmem:[%s1089 + $0x1] sm:$0xff] %v1299
        %1402 = vst [vmem:[%s1089 + $0x9] sm:$0xff] %v1300
        %1403 = vst [vmem:[%s1089 + $0x11] sm:$0xff] %v1301
        %1404 = vst [vmem:[%s1089 + $0x19] sm:$0xff] %v1302
        %1405 = vst [vmem:[%s1089 + $0x21] sm:$0xff] %v1303
        %1406 = vst [vmem:[%s1089 + $0x29] sm:$0xff] %v1304
        %1407 = vst [vmem:[%s1089 + $0x31] sm:$0xff] %v1305
        %1408 = vst [vmem:[%s1089 + $0x39] sm:$0xff] %v1306
        %1409 = vst [vmem:[%s1089 + $0x41] sm:$0xff] %v1307
        %1410 = vst [vmem:[%s1089 + $0x49] sm:$0xff] %v1308
        %1411 = vst [vmem:[%s1089 + $0x51] sm:$0xff] %v1309
        %1412 = vst [vmem:[%s1089 + $0x59] sm:$0xff] %v1310
        %1413 = vst [vmem:[%s1089 + $0x61] sm:$0xff] %v1311
        %1414 = vst [vmem:[%s1089 + $0x69] sm:$0xff] %v1312
        %1415 = vst [vmem:[%s1089 + $0x71] sm:$0xff] %v1313
        %1416 = vst [vmem:[%s1089 + $0x79] sm:$0xff] %v1314
        %1417 = vst [vmem:[%s1089 + $0x81] sm:$0xff] %v1315
        %1418 = vst [vmem:[%s1089 + $0x89] sm:$0xff] %v1316
        %1419 = vst [vmem:[%s1089 + $0x91] sm:$0xff] %v1317
        %1420 = vst [vmem:[%s1089 + $0x99] sm:$0xff] %v1318
        %1421 = vst [vmem:[%s1089 + $0xa1] sm:$0xff] %v1319
        %1422 = vst [vmem:[%s1089 + $0xa9] sm:$0xff] %v1320
        %1423 = vst [vmem:[%s1089 + $0xb1] sm:$0xff] %v1321
        %1424 = vst [vmem:[%s1089 + $0xb9] sm:$0xff] %v1322
        %1425 = vst [vmem:[%s1089 + $0xc1] sm:$0xff] %v1323
        %1426 = vst [vmem:[%s1089 + $0xc9] sm:$0xff] %v1324
        %1427 = vst [vmem:[%s1089 + $0xd1] sm:$0xff] %v1325
        %1428 = vst [vmem:[%s1089 + $0xd9] sm:$0xff] %v1326
        %1429 = vst [vmem:[%s1089 + $0xe1] sm:$0xff] %v1327
        %1430 = vst [vmem:[%s1089 + $0xe9] sm:$0xff] %v1328
        %1431 = vst [vmem:[%s1089 + $0xf1] sm:$0xff] %v1329
        %1432 = vst [vmem:[%s1089 + $0xf9] sm:$0xff] %v1330
        %1433 = vst [vmem:[%s1089 + $0x101] sm:$0xff] %v1331
        %1434 = vst [vmem:[%s1089 + $0x109] sm:$0xff] %v1332
        %1435 = vst [vmem:[%s1089 + $0x111] sm:$0xff] %v1333
        %1436 = vst [vmem:[%s1089 + $0x119] sm:$0xff] %v1334
        %1437 = vst [vmem:[%s1089 + $0x121] sm:$0xff] %v1335
        %1438 = vst [vmem:[%s1089 + $0x129] sm:$0xff] %v1336
        %1439 = vst [vmem:[%s1089 + $0x131] sm:$0xff] %v1337
        %1440 = vst [vmem:[%s1089 + $0x139] sm:$0xff] %v1338
        %1441 = vst [vmem:[%s1089 + $0x141] sm:$0xff] %v1339
        %1442 = vst [vmem:[%s1089 + $0x149] sm:$0xff] %v1340
        %1443 = vst [vmem:[%s1089 + $0x151] sm:$0xff] %v1341
        %1444 = vst [vmem:[%s1089 + $0x159] sm:$0xff] %v1342
        %1445 = vst [vmem:[%s1089 + $0x161] sm:$0xff] %v1343
        %1446 = vst [vmem:[%s1089 + $0x169] sm:$0xff] %v1344
        %1447 = vst [vmem:[%s1089 + $0x171] sm:$0xff] %v1345
        %1448 = vst [vmem:[%s1089 + $0x179] sm:$0xff] %v1346
        %1449 = vst [vmem:[%s1089 + $0x181] sm:$0xff] %v1347
        %1450 = vst [vmem:[%s1089 + $0x189] sm:$0xff] %v1348
        %1451 = vst [vmem:[%s1089 + $0x191] sm:$0xff] %v1349
        %1452 = vst [vmem:[%s1089 + $0x199] sm:$0xff] %v1350
        %1453 = vst [vmem:[%s1089 + $0x1a1] sm:$0xff] %v1351
        %1454 = vst [vmem:[%s1089 + $0x1a9] sm:$0xff] %v1352
        %1455 = vst [vmem:[%s1089 + $0x1b1] sm:$0xff] %v1353
        %1456 = vst [vmem:[%s1089 + $0x1b9] sm:$0xff] %v1354
        %1457 = vst [vmem:[%s1089 + $0x1c1] sm:$0xff] %v1355
        %1458 = vst [vmem:[%s1089 + $0x1c9] sm:$0xff] %v1356
        %1459 = vst [vmem:[%s1089 + $0x1d1] sm:$0xff] %v1357
        %1460 = vst [vmem:[%s1089 + $0x1d9] sm:$0xff] %v1358
        %1461 = vst [vmem:[%s1089 + $0x1e1] sm:$0xff] %v1359
        %1462 = vst [vmem:[%s1089 + $0x1e9] sm:$0xff] %v1360
        %1463 = vst [vmem:[%s1089 + $0x1f1] sm:$0xff] %v1361
        %1464 = vst [vmem:[%s1089 + $0x1f9] sm:$0xff] %v1362
        %1465 = vst [vmem:[%s1089 + $0x201] sm:$0xff] %v1363
        %1466 = vst [vmem:[%s1089 + $0x209] sm:$0xff] %v1364
        %1467 = vst [vmem:[%s1089 + $0x211] sm:$0xff] %v1365
        %1468 = vst [vmem:[%s1089 + $0x219] sm:$0xff] %v1366
        %1469 = vst [vmem:[%s1089 + $0x221] sm:$0xff] %v1367
        %1470 = vst [vmem:[%s1089 + $0x229] sm:$0xff] %v1368
        %1471 = vst [vmem:[%s1089 + $0x231] sm:$0xff] %v1369
        %1472 = vst [vmem:[%s1089 + $0x239] sm:$0xff] %v1370
        %1473 = vst [vmem:[%s1089 + $0x241] sm:$0xff] %v1371
        %1474 = vst [vmem:[%s1089 + $0x249] sm:$0xff] %v1372
        %1475 = vst [vmem:[%s1089 + $0x251] sm:$0xff] %v1373
        %1476 = vst [vmem:[%s1089 + $0x259] sm:$0xff] %v1374
        %1477 = vst [vmem:[%s1089 + $0x261] sm:$0xff] %v1375
        %1478 = vst [vmem:[%s1089 + $0x269] sm:$0xff] %v1376
        %1479 = vst [vmem:[%s1089 + $0x271] sm:$0xff] %v1377
        %1480 = vst [vmem:[%s1089 + $0x279] sm:$0xff] %v1378
        %1481 = vst [vmem:[%s1089 + $0x281] sm:$0xff] %v1379
        %1482 = vst [vmem:[%s1089 + $0x289] sm:$0xff] %v1380
        %1483 = vst [vmem:[%s1089 + $0x291] sm:$0xff] %v1381
        %1484 = vst [vmem:[%s1089 + $0x299] sm:$0xff] %v1382
        %1485 = vst [vmem:[%s1089 + $0x2a1] sm:$0xff] %v1383
        %1486 = vst [vmem:[%s1089 + $0x2a9] sm:$0xff] %v1384
        %1487 = vst [vmem:[%s1089 + $0x2b1] sm:$0xff] %v1385
        %1488 = vst [vmem:[%s1089 + $0x2b9] sm:$0xff] %v1386
        %1489 = vst [vmem:[%s1089 + $0x2c1] sm:$0xff] %v1387
        %1490 = vst [vmem:[%s1089 + $0x2c9] sm:$0xff] %v1388
        %1491 = vst [vmem:[%s1089 + $0x2d1] sm:$0xff] %v1389
        %1492 = vst [vmem:[%s1089 + $0x2d9] sm:$0xff] %v1390
        %1493 = vst [vmem:[%s1089 + $0x2e1] sm:$0xff] %v1391
        %1494 = vst [vmem:[%s1089 + $0x2e9] sm:$0xff] %v1392
        %1495 = vst [vmem:[%s1089 + $0x2f1] sm:$0xff] %v1393
        %1496 = vst [vmem:[%s1089 + $0x2f9] sm:$0xff] %v1394
        %1497 = vst [vmem:[%s1089 + $0x301] sm:$0xff] %v1395
        %1498 = vst [vmem:[%s1089 + $0x309] sm:$0xff] %v1396
        %1499 = vst [vmem:[%s1089 + $0x311] sm:$0xff] %v1397
        %1500 = vst [vmem:[%s1089 + $0x319] sm:$0xff] %v1398
        %1501 = vst [vmem:[%s1089 + $0x321] sm:$0xff] %v1399
        %1502 = vst [vmem:[%s1089 + $0x329] sm:$0x3] %v1400
        %s1503 = sand.u32 %s116, 1
        %s1504 = sand.u32 %s116, 1
        %s1505 = smul.addr %s1504, 816
        %s1506 = scalar_lea.vmem [#allocation4], %s1505
        // Predicated region
        $region109: #{embedding_forward.1} parent=99 // pred_check
          %p1507 = pneg %p126
        $region110: #{embedding_forward.1} parent=99 // pred_check_branch
          %1509 = sbr.rel (%p1507) target = $region112
        $region111: #{embedding_forward.1} parent=99 // pred_region
          %s1510 = smul.addr %s18, 204
          %s1511 = sadd.s32 %s19, %s1510
          %s1512 = smul.addr %s1511, 8
          %s1513 = scalar_lea.vmem %s3, %s1512
          // Predicated region
          $region113: #{embedding_forward.1} parent=111 // pred_check
            _
          $region114: #{embedding_forward.1} parent=111 // pred_check_branch
            %1515 = sbr.rel (0) target = $region116
          $region115: #{embedding_forward.1} parent=111 // pred_region
            // Predicated region
            $region117: #{embedding_forward.1} parent=115 // pred_check
              _
            $region118: #{embedding_forward.1} parent=115 // pred_check_branch
              %1517 = sbr.rel (0) target = $region120
            $region119: #{embedding_forward.1} parent=115 // pred_region
              // Predicated region
              $region132: #{embedding_forward.1} parent=119 // pred_check
                _
              $region133: #{embedding_forward.1} parent=119 // pred_check_branch
                %1734 = sbr.rel (0) target = $region135
              $region134: #{embedding_forward.1} parent=119 // pred_region
                loop: start=0, step=1, limit=1
                $region136: #{embedding_forward.1} parent=134 // loop_pre_header
                  _
                $region137: #{embedding_forward.1} parent=134 // loop_header
                  %s1736 = sphi 0, %s1740
                  %p1737 = scmp.ge.s32.totalorder %s1736, 1
                  %s1741 = sphi %s1506, %s1506
                  %s1742 = sphi %s1513, %s1513
                $region138: #{embedding_forward.1} parent=134 // loop_header_branch
                  %1739 = sbr.rel (%p1737) target = $region142
                $region139: #{embedding_forward.1} parent=134 // loop_body
                  %v1743 = vld [vmem:[%s1741] sm:$0xff]
                  %1744 = vst [vmem:[%s1742] sm:$0xff] %v1743
                  %v1745 = vld [vmem:[%s1741 + $0x8] sm:$0xff]
                  %1746 = vst [vmem:[%s1742 + $0x10] sm:$0xff] %v1745
                  %v1747 = vld [vmem:[%s1741 + $0x10] sm:$0xff]
                  %1748 = vst [vmem:[%s1742 + $0x20] sm:$0xff] %v1747
                  %v1749 = vld [vmem:[%s1741 + $0x18] sm:$0xff]
                  %1750 = vst [vmem:[%s1742 + $0x30] sm:$0xff] %v1749
                  %v1751 = vld [vmem:[%s1741 + $0x20] sm:$0xff]
                  %1752 = vst [vmem:[%s1742 + $0x40] sm:$0xff] %v1751
                  %v1753 = vld [vmem:[%s1741 + $0x28] sm:$0xff]
                  %1754 = vst [vmem:[%s1742 + $0x50] sm:$0xff] %v1753
                  %v1755 = vld [vmem:[%s1741 + $0x30] sm:$0xff]
                  %1756 = vst [vmem:[%s1742 + $0x60] sm:$0xff] %v1755
                  %v1757 = vld [vmem:[%s1741 + $0x38] sm:$0xff]
                  %1758 = vst [vmem:[%s1742 + $0x70] sm:$0xff] %v1757
                  %v1759 = vld [vmem:[%s1741 + $0x40] sm:$0xff]
                  %1760 = vst [vmem:[%s1742 + $0x80] sm:$0xff] %v1759
                  %v1761 = vld [vmem:[%s1741 + $0x48] sm:$0xff]
                  %1762 = vst [vmem:[%s1742 + $0x90] sm:$0xff] %v1761
                  %v1763 = vld [vmem:[%s1741 + $0x50] sm:$0xff]
                  %1764 = vst [vmem:[%s1742 + $0xa0] sm:$0xff] %v1763
                  %v1765 = vld [vmem:[%s1741 + $0x58] sm:$0xff]
                  %1766 = vst [vmem:[%s1742 + $0xb0] sm:$0xff] %v1765
                  %v1767 = vld [vmem:[%s1741 + $0x60] sm:$0xff]
                  %1768 = vst [vmem:[%s1742 + $0xc0] sm:$0xff] %v1767
                  %v1769 = vld [vmem:[%s1741 + $0x68] sm:$0xff]
                  %1770 = vst [vmem:[%s1742 + $0xd0] sm:$0xff] %v1769
                  %v1771 = vld [vmem:[%s1741 + $0x70] sm:$0xff]
                  %1772 = vst [vmem:[%s1742 + $0xe0] sm:$0xff] %v1771
                  %v1773 = vld [vmem:[%s1741 + $0x78] sm:$0xff]
                  %1774 = vst [vmem:[%s1742 + $0xf0] sm:$0xff] %v1773
                  %v1775 = vld [vmem:[%s1741 + $0x80] sm:$0xff]
                  %1776 = vst [vmem:[%s1742 + $0x100] sm:$0xff] %v1775
                  %v1777 = vld [vmem:[%s1741 + $0x88] sm:$0xff]
                  %1778 = vst [vmem:[%s1742 + $0x110] sm:$0xff] %v1777
                  %v1779 = vld [vmem:[%s1741 + $0x90] sm:$0xff]
                  %1780 = vst [vmem:[%s1742 + $0x120] sm:$0xff] %v1779
                  %v1781 = vld [vmem:[%s1741 + $0x98] sm:$0xff]
                  %1782 = vst [vmem:[%s1742 + $0x130] sm:$0xff] %v1781
                  %v1783 = vld [vmem:[%s1741 + $0xa0] sm:$0xff]
                  %1784 = vst [vmem:[%s1742 + $0x140] sm:$0xff] %v1783
                  %v1785 = vld [vmem:[%s1741 + $0xa8] sm:$0xff]
                  %1786 = vst [vmem:[%s1742 + $0x150] sm:$0xff] %v1785
                  %v1787 = vld [vmem:[%s1741 + $0xb0] sm:$0xff]
                  %1788 = vst [vmem:[%s1742 + $0x160] sm:$0xff] %v1787
                  %v1789 = vld [vmem:[%s1741 + $0xb8] sm:$0xff]
                  %1790 = vst [vmem:[%s1742 + $0x170] sm:$0xff] %v1789
                  %v1791 = vld [vmem:[%s1741 + $0xc0] sm:$0xff]
                  %1792 = vst [vmem:[%s1742 + $0x180] sm:$0xff] %v1791
                  %v1793 = vld [vmem:[%s1741 + $0xc8] sm:$0xff]
                  %1794 = vst [vmem:[%s1742 + $0x190] sm:$0xff] %v1793
                  %v1795 = vld [vmem:[%s1741 + $0xd0] sm:$0xff]
                  %1796 = vst [vmem:[%s1742 + $0x1a0] sm:$0xff] %v1795
                  %v1797 = vld [vmem:[%s1741 + $0xd8] sm:$0xff]
                  %1798 = vst [vmem:[%s1742 + $0x1b0] sm:$0xff] %v1797
                  %v1799 = vld [vmem:[%s1741 + $0xe0] sm:$0xff]
                  %1800 = vst [vmem:[%s1742 + $0x1c0] sm:$0xff] %v1799
                  %v1801 = vld [vmem:[%s1741 + $0xe8] sm:$0xff]
                  %1802 = vst [vmem:[%s1742 + $0x1d0] sm:$0xff] %v1801
                  %v1803 = vld [vmem:[%s1741 + $0xf0] sm:$0xff]
                  %1804 = vst [vmem:[%s1742 + $0x1e0] sm:$0xff] %v1803
                  %v1805 = vld [vmem:[%s1741 + $0xf8] sm:$0xff]
                  %1806 = vst [vmem:[%s1742 + $0x1f0] sm:$0xff] %v1805
                  %v1807 = vld [vmem:[%s1741 + $0x100] sm:$0xff]
                  %1808 = vst [vmem:[%s1742 + $0x200] sm:$0xff] %v1807
                  %v1809 = vld [vmem:[%s1741 + $0x108] sm:$0xff]
                  %1810 = vst [vmem:[%s1742 + $0x210] sm:$0xff] %v1809
                  %v1811 = vld [vmem:[%s1741 + $0x110] sm:$0xff]
                  %1812 = vst [vmem:[%s1742 + $0x220] sm:$0xff] %v1811
                  %v1813 = vld [vmem:[%s1741 + $0x118] sm:$0xff]
                  %1814 = vst [vmem:[%s1742 + $0x230] sm:$0xff] %v1813
                  %v1815 = vld [vmem:[%s1741 + $0x120] sm:$0xff]
                  %1816 = vst [vmem:[%s1742 + $0x240] sm:$0xff] %v1815
                  %v1817 = vld [vmem:[%s1741 + $0x128] sm:$0xff]
                  %1818 = vst [vmem:[%s1742 + $0x250] sm:$0xff] %v1817
                  %v1819 = vld [vmem:[%s1741 + $0x130] sm:$0xff]
                  %1820 = vst [vmem:[%s1742 + $0x260] sm:$0xff] %v1819
                  %v1821 = vld [vmem:[%s1741 + $0x138] sm:$0xff]
                  %1822 = vst [vmem:[%s1742 + $0x270] sm:$0xff] %v1821
                  %v1823 = vld [vmem:[%s1741 + $0x140] sm:$0xff]
                  %1824 = vst [vmem:[%s1742 + $0x280] sm:$0xff] %v1823
                  %v1825 = vld [vmem:[%s1741 + $0x148] sm:$0xff]
                  %1826 = vst [vmem:[%s1742 + $0x290] sm:$0xff] %v1825
                  %v1827 = vld [vmem:[%s1741 + $0x150] sm:$0xff]
                  %1828 = vst [vmem:[%s1742 + $0x2a0] sm:$0xff] %v1827
                  %v1829 = vld [vmem:[%s1741 + $0x158] sm:$0xff]
                  %1830 = vst [vmem:[%s1742 + $0x2b0] sm:$0xff] %v1829
                  %v1831 = vld [vmem:[%s1741 + $0x160] sm:$0xff]
                  %1832 = vst [vmem:[%s1742 + $0x2c0] sm:$0xff] %v1831
                  %v1833 = vld [vmem:[%s1741 + $0x168] sm:$0xff]
                  %1834 = vst [vmem:[%s1742 + $0x2d0] sm:$0xff] %v1833
                  %v1835 = vld [vmem:[%s1741 + $0x170] sm:$0xff]
                  %1836 = vst [vmem:[%s1742 + $0x2e0] sm:$0xff] %v1835
                  %v1837 = vld [vmem:[%s1741 + $0x178] sm:$0xff]
                  %1838 = vst [vmem:[%s1742 + $0x2f0] sm:$0xff] %v1837
                  %v1839 = vld [vmem:[%s1741 + $0x180] sm:$0xff]
                  %1840 = vst [vmem:[%s1742 + $0x300] sm:$0xff] %v1839
                  %v1841 = vld [vmem:[%s1741 + $0x188] sm:$0xff]
                  %1842 = vst [vmem:[%s1742 + $0x310] sm:$0xff] %v1841
                  %v1843 = vld [vmem:[%s1741 + $0x190] sm:$0xff]
                  %1844 = vst [vmem:[%s1742 + $0x320] sm:$0xff] %v1843
                  %v1845 = vld [vmem:[%s1741 + $0x198] sm:$0xff]
                  %1846 = vst [vmem:[%s1742 + $0x330] sm:$0xff] %v1845
                  %v1847 = vld [vmem:[%s1741 + $0x1a0] sm:$0xff]
                  %1848 = vst [vmem:[%s1742 + $0x340] sm:$0xff] %v1847
                  %v1849 = vld [vmem:[%s1741 + $0x1a8] sm:$0xff]
                  %1850 = vst [vmem:[%s1742 + $0x350] sm:$0xff] %v1849
                  %v1851 = vld [vmem:[%s1741 + $0x1b0] sm:$0xff]
                  %1852 = vst [vmem:[%s1742 + $0x360] sm:$0xff] %v1851
                  %v1853 = vld [vmem:[%s1741 + $0x1b8] sm:$0xff]
                  %1854 = vst [vmem:[%s1742 + $0x370] sm:$0xff] %v1853
                  %v1855 = vld [vmem:[%s1741 + $0x1c0] sm:$0xff]
                  %1856 = vst [vmem:[%s1742 + $0x380] sm:$0xff] %v1855
                  %v1857 = vld [vmem:[%s1741 + $0x1c8] sm:$0xff]
                  %1858 = vst [vmem:[%s1742 + $0x390] sm:$0xff] %v1857
                  %v1859 = vld [vmem:[%s1741 + $0x1d0] sm:$0xff]
                  %1860 = vst [vmem:[%s1742 + $0x3a0] sm:$0xff] %v1859
                  %v1861 = vld [vmem:[%s1741 + $0x1d8] sm:$0xff]
                  %1862 = vst [vmem:[%s1742 + $0x3b0] sm:$0xff] %v1861
                  %v1863 = vld [vmem:[%s1741 + $0x1e0] sm:$0xff]
                  %1864 = vst [vmem:[%s1742 + $0x3c0] sm:$0xff] %v1863
                  %v1865 = vld [vmem:[%s1741 + $0x1e8] sm:$0xff]
                  %1866 = vst [vmem:[%s1742 + $0x3d0] sm:$0xff] %v1865
                  %v1867 = vld [vmem:[%s1741 + $0x1f0] sm:$0xff]
                  %1868 = vst [vmem:[%s1742 + $0x3e0] sm:$0xff] %v1867
                  %v1869 = vld [vmem:[%s1741 + $0x1f8] sm:$0xff]
                  %1870 = vst [vmem:[%s1742 + $0x3f0] sm:$0xff] %v1869
                  %v1871 = vld [vmem:[%s1741 + $0x200] sm:$0xff]
                  %1872 = vst [vmem:[%s1742 + $0x400] sm:$0xff] %v1871
                  %v1873 = vld [vmem:[%s1741 + $0x208] sm:$0xff]
                  %1874 = vst [vmem:[%s1742 + $0x410] sm:$0xff] %v1873
                  %v1875 = vld [vmem:[%s1741 + $0x210] sm:$0xff]
                  %1876 = vst [vmem:[%s1742 + $0x420] sm:$0xff] %v1875
                  %v1877 = vld [vmem:[%s1741 + $0x218] sm:$0xff]
                  %1878 = vst [vmem:[%s1742 + $0x430] sm:$0xff] %v1877
                  %v1879 = vld [vmem:[%s1741 + $0x220] sm:$0xff]
                  %1880 = vst [vmem:[%s1742 + $0x440] sm:$0xff] %v1879
                  %v1881 = vld [vmem:[%s1741 + $0x228] sm:$0xff]
                  %1882 = vst [vmem:[%s1742 + $0x450] sm:$0xff] %v1881
                  %v1883 = vld [vmem:[%s1741 + $0x230] sm:$0xff]
                  %1884 = vst [vmem:[%s1742 + $0x460] sm:$0xff] %v1883
                  %v1885 = vld [vmem:[%s1741 + $0x238] sm:$0xff]
                  %1886 = vst [vmem:[%s1742 + $0x470] sm:$0xff] %v1885
                  %v1887 = vld [vmem:[%s1741 + $0x240] sm:$0xff]
                  %1888 = vst [vmem:[%s1742 + $0x480] sm:$0xff] %v1887
                  %v1889 = vld [vmem:[%s1741 + $0x248] sm:$0xff]
                  %1890 = vst [vmem:[%s1742 + $0x490] sm:$0xff] %v1889
                  %v1891 = vld [vmem:[%s1741 + $0x250] sm:$0xff]
                  %1892 = vst [vmem:[%s1742 + $0x4a0] sm:$0xff] %v1891
                  %v1893 = vld [vmem:[%s1741 + $0x258] sm:$0xff]
                  %1894 = vst [vmem:[%s1742 + $0x4b0] sm:$0xff] %v1893
                  %v1895 = vld [vmem:[%s1741 + $0x260] sm:$0xff]
                  %1896 = vst [vmem:[%s1742 + $0x4c0] sm:$0xff] %v1895
                  %v1897 = vld [vmem:[%s1741 + $0x268] sm:$0xff]
                  %1898 = vst [vmem:[%s1742 + $0x4d0] sm:$0xff] %v1897
                  %v1899 = vld [vmem:[%s1741 + $0x270] sm:$0xff]
                  %1900 = vst [vmem:[%s1742 + $0x4e0] sm:$0xff] %v1899
                  %v1901 = vld [vmem:[%s1741 + $0x278] sm:$0xff]
                  %1902 = vst [vmem:[%s1742 + $0x4f0] sm:$0xff] %v1901
                  %v1903 = vld [vmem:[%s1741 + $0x280] sm:$0xff]
                  %1904 = vst [vmem:[%s1742 + $0x500] sm:$0xff] %v1903
                  %v1905 = vld [vmem:[%s1741 + $0x288] sm:$0xff]
                  %1906 = vst [vmem:[%s1742 + $0x510] sm:$0xff] %v1905
                  %v1907 = vld [vmem:[%s1741 + $0x290] sm:$0xff]
                  %1908 = vst [vmem:[%s1742 + $0x520] sm:$0xff] %v1907
                  %v1909 = vld [vmem:[%s1741 + $0x298] sm:$0xff]
                  %1910 = vst [vmem:[%s1742 + $0x530] sm:$0xff] %v1909
                  %v1911 = vld [vmem:[%s1741 + $0x2a0] sm:$0xff]
                  %1912 = vst [vmem:[%s1742 + $0x540] sm:$0xff] %v1911
                  %v1913 = vld [vmem:[%s1741 + $0x2a8] sm:$0xff]
                  %1914 = vst [vmem:[%s1742 + $0x550] sm:$0xff] %v1913
                  %v1915 = vld [vmem:[%s1741 + $0x2b0] sm:$0xff]
                  %1916 = vst [vmem:[%s1742 + $0x560] sm:$0xff] %v1915
                  %v1917 = vld [vmem:[%s1741 + $0x2b8] sm:$0xff]
                  %1918 = vst [vmem:[%s1742 + $0x570] sm:$0xff] %v1917
                  %v1919 = vld [vmem:[%s1741 + $0x2c0] sm:$0xff]
                  %1920 = vst [vmem:[%s1742 + $0x580] sm:$0xff] %v1919
                  %v1921 = vld [vmem:[%s1741 + $0x2c8] sm:$0xff]
                  %1922 = vst [vmem:[%s1742 + $0x590] sm:$0xff] %v1921
                  %v1923 = vld [vmem:[%s1741 + $0x2d0] sm:$0xff]
                  %1924 = vst [vmem:[%s1742 + $0x5a0] sm:$0xff] %v1923
                  %v1925 = vld [vmem:[%s1741 + $0x2d8] sm:$0xff]
                  %1926 = vst [vmem:[%s1742 + $0x5b0] sm:$0xff] %v1925
                  %v1927 = vld [vmem:[%s1741 + $0x2e0] sm:$0xff]
                  %1928 = vst [vmem:[%s1742 + $0x5c0] sm:$0xff] %v1927
                  %v1929 = vld [vmem:[%s1741 + $0x2e8] sm:$0xff]
                  %1930 = vst [vmem:[%s1742 + $0x5d0] sm:$0xff] %v1929
                  %v1931 = vld [vmem:[%s1741 + $0x2f0] sm:$0xff]
                  %1932 = vst [vmem:[%s1742 + $0x5e0] sm:$0xff] %v1931
                  %v1933 = vld [vmem:[%s1741 + $0x2f8] sm:$0xff]
                  %1934 = vst [vmem:[%s1742 + $0x5f0] sm:$0xff] %v1933
                  %v1935 = vld [vmem:[%s1741 + $0x300] sm:$0xff]
                  %1936 = vst [vmem:[%s1742 + $0x600] sm:$0xff] %v1935
                  %v1937 = vld [vmem:[%s1741 + $0x308] sm:$0xff]
                  %1938 = vst [vmem:[%s1742 + $0x610] sm:$0xff] %v1937
                  %v1939 = vld [vmem:[%s1741 + $0x310] sm:$0xff]
                  %1940 = vst [vmem:[%s1742 + $0x620] sm:$0xff] %v1939
                  %v1941 = vld [vmem:[%s1741 + $0x318] sm:$0xff]
                  %1942 = vst [vmem:[%s1742 + $0x630] sm:$0xff] %v1941
                  %v1943 = vld [vmem:[%s1741 + $0x320] sm:$0xff]
                  %1944 = vst [vmem:[%s1742 + $0x640] sm:$0xff] %v1943
                  %v1945 = vld [vmem:[%s1741 + $0x328] sm:$0xff]
                  %1946 = vst [vmem:[%s1742 + $0x650] sm:$0xff] %v1945
                $region140: #{embedding_forward.1} parent=134 // loop_footer
                  %s1740 = sadd.s32 1, %s1736
                $region141: #{embedding_forward.1} parent=134 // loop_footer_branch
                  %1735 = sbr.rel target = $region137
                $region142: #{embedding_forward.1} parent=134 // loop_exit
                  _
              $region135: #{embedding_forward.1} parent=119 // pred_fallthru
                _
              // Predicated region
              $region143: #{embedding_forward.1} parent=119 // pred_check
                _
              $region144: #{embedding_forward.1} parent=119 // pred_check_branch
                %1948 = sbr.rel target = $region146
              $region145: #{embedding_forward.1} parent=119 // pred_region
                _
              $region146: #{embedding_forward.1} parent=119 // pred_fallthru
                _
            $region120: #{embedding_forward.1} parent=115 // pred_fallthru
              _
            // Predicated region
            $region121: #{embedding_forward.1} parent=115 // pred_check
              _
            $region122: #{embedding_forward.1} parent=115 // pred_check_branch
              %1519 = sbr.rel target = $region124
            $region123: #{embedding_forward.1} parent=115 // pred_region
              loop: start=0, step=1, limit=1
              $region125: #{embedding_forward.1} parent=123 // loop_pre_header
                _
              $region126: #{embedding_forward.1} parent=123 // loop_header
                %s1522 = sphi 0, %s1526
                %p1523 = scmp.ge.s32.totalorder %s1522, 1
                %s1527 = sphi %s1506, %s1506
                %s1528 = sphi %s1513, %s1513
              $region127: #{embedding_forward.1} parent=123 // loop_header_branch
                %1525 = sbr.rel (%p1523) target = $region131
              $region128: #{embedding_forward.1} parent=123 // loop_body
                %v1529 = vld [vmem:[%s1527] sm:$0xff]
                %1530 = vst [vmem:[%s1528] sm:$0xff] %v1529
                %v1531 = vld [vmem:[%s1527 + $0x8] sm:$0xff]
                %1532 = vst [vmem:[%s1528 + $0x10] sm:$0xff] %v1531
                %v1533 = vld [vmem:[%s1527 + $0x10] sm:$0xff]
                %1534 = vst [vmem:[%s1528 + $0x20] sm:$0xff] %v1533
                %v1535 = vld [vmem:[%s1527 + $0x18] sm:$0xff]
                %1536 = vst [vmem:[%s1528 + $0x30] sm:$0xff] %v1535
                %v1537 = vld [vmem:[%s1527 + $0x20] sm:$0xff]
                %1538 = vst [vmem:[%s1528 + $0x40] sm:$0xff] %v1537
                %v1539 = vld [vmem:[%s1527 + $0x28] sm:$0xff]
                %1540 = vst [vmem:[%s1528 + $0x50] sm:$0xff] %v1539
                %v1541 = vld [vmem:[%s1527 + $0x30] sm:$0xff]
                %1542 = vst [vmem:[%s1528 + $0x60] sm:$0xff] %v1541
                %v1543 = vld [vmem:[%s1527 + $0x38] sm:$0xff]
                %1544 = vst [vmem:[%s1528 + $0x70] sm:$0xff] %v1543
                %v1545 = vld [vmem:[%s1527 + $0x40] sm:$0xff]
                %1546 = vst [vmem:[%s1528 + $0x80] sm:$0xff] %v1545
                %v1547 = vld [vmem:[%s1527 + $0x48] sm:$0xff]
                %1548 = vst [vmem:[%s1528 + $0x90] sm:$0xff] %v1547
                %v1549 = vld [vmem:[%s1527 + $0x50] sm:$0xff]
                %1550 = vst [vmem:[%s1528 + $0xa0] sm:$0xff] %v1549
                %v1551 = vld [vmem:[%s1527 + $0x58] sm:$0xff]
                %1552 = vst [vmem:[%s1528 + $0xb0] sm:$0xff] %v1551
                %v1553 = vld [vmem:[%s1527 + $0x60] sm:$0xff]
                %1554 = vst [vmem:[%s1528 + $0xc0] sm:$0xff] %v1553
                %v1555 = vld [vmem:[%s1527 + $0x68] sm:$0xff]
                %1556 = vst [vmem:[%s1528 + $0xd0] sm:$0xff] %v1555
                %v1557 = vld [vmem:[%s1527 + $0x70] sm:$0xff]
                %1558 = vst [vmem:[%s1528 + $0xe0] sm:$0xff] %v1557
                %v1559 = vld [vmem:[%s1527 + $0x78] sm:$0xff]
                %1560 = vst [vmem:[%s1528 + $0xf0] sm:$0xff] %v1559
                %v1561 = vld [vmem:[%s1527 + $0x80] sm:$0xff]
                %1562 = vst [vmem:[%s1528 + $0x100] sm:$0xff] %v1561
                %v1563 = vld [vmem:[%s1527 + $0x88] sm:$0xff]
                %1564 = vst [vmem:[%s1528 + $0x110] sm:$0xff] %v1563
                %v1565 = vld [vmem:[%s1527 + $0x90] sm:$0xff]
                %1566 = vst [vmem:[%s1528 + $0x120] sm:$0xff] %v1565
                %v1567 = vld [vmem:[%s1527 + $0x98] sm:$0xff]
                %1568 = vst [vmem:[%s1528 + $0x130] sm:$0xff] %v1567
                %v1569 = vld [vmem:[%s1527 + $0xa0] sm:$0xff]
                %1570 = vst [vmem:[%s1528 + $0x140] sm:$0xff] %v1569
                %v1571 = vld [vmem:[%s1527 + $0xa8] sm:$0xff]
                %1572 = vst [vmem:[%s1528 + $0x150] sm:$0xff] %v1571
                %v1573 = vld [vmem:[%s1527 + $0xb0] sm:$0xff]
                %1574 = vst [vmem:[%s1528 + $0x160] sm:$0xff] %v1573
                %v1575 = vld [vmem:[%s1527 + $0xb8] sm:$0xff]
                %1576 = vst [vmem:[%s1528 + $0x170] sm:$0xff] %v1575
                %v1577 = vld [vmem:[%s1527 + $0xc0] sm:$0xff]
                %1578 = vst [vmem:[%s1528 + $0x180] sm:$0xff] %v1577
                %v1579 = vld [vmem:[%s1527 + $0xc8] sm:$0xff]
                %1580 = vst [vmem:[%s1528 + $0x190] sm:$0xff] %v1579
                %v1581 = vld [vmem:[%s1527 + $0xd0] sm:$0xff]
                %1582 = vst [vmem:[%s1528 + $0x1a0] sm:$0xff] %v1581
                %v1583 = vld [vmem:[%s1527 + $0xd8] sm:$0xff]
                %1584 = vst [vmem:[%s1528 + $0x1b0] sm:$0xff] %v1583
                %v1585 = vld [vmem:[%s1527 + $0xe0] sm:$0xff]
                %1586 = vst [vmem:[%s1528 + $0x1c0] sm:$0xff] %v1585
                %v1587 = vld [vmem:[%s1527 + $0xe8] sm:$0xff]
                %1588 = vst [vmem:[%s1528 + $0x1d0] sm:$0xff] %v1587
                %v1589 = vld [vmem:[%s1527 + $0xf0] sm:$0xff]
                %1590 = vst [vmem:[%s1528 + $0x1e0] sm:$0xff] %v1589
                %v1591 = vld [vmem:[%s1527 + $0xf8] sm:$0xff]
                %1592 = vst [vmem:[%s1528 + $0x1f0] sm:$0xff] %v1591
                %v1593 = vld [vmem:[%s1527 + $0x100] sm:$0xff]
                %1594 = vst [vmem:[%s1528 + $0x200] sm:$0xff] %v1593
                %v1595 = vld [vmem:[%s1527 + $0x108] sm:$0xff]
                %1596 = vst [vmem:[%s1528 + $0x210] sm:$0xff] %v1595
                %v1597 = vld [vmem:[%s1527 + $0x110] sm:$0xff]
                %1598 = vst [vmem:[%s1528 + $0x220] sm:$0xff] %v1597
                %v1599 = vld [vmem:[%s1527 + $0x118] sm:$0xff]
                %1600 = vst [vmem:[%s1528 + $0x230] sm:$0xff] %v1599
                %v1601 = vld [vmem:[%s1527 + $0x120] sm:$0xff]
                %1602 = vst [vmem:[%s1528 + $0x240] sm:$0xff] %v1601
                %v1603 = vld [vmem:[%s1527 + $0x128] sm:$0xff]
                %1604 = vst [vmem:[%s1528 + $0x250] sm:$0xff] %v1603
                %v1605 = vld [vmem:[%s1527 + $0x130] sm:$0xff]
                %1606 = vst [vmem:[%s1528 + $0x260] sm:$0xff] %v1605
                %v1607 = vld [vmem:[%s1527 + $0x138] sm:$0xff]
                %1608 = vst [vmem:[%s1528 + $0x270] sm:$0xff] %v1607
                %v1609 = vld [vmem:[%s1527 + $0x140] sm:$0xff]
                %1610 = vst [vmem:[%s1528 + $0x280] sm:$0xff] %v1609
                %v1611 = vld [vmem:[%s1527 + $0x148] sm:$0xff]
                %1612 = vst [vmem:[%s1528 + $0x290] sm:$0xff] %v1611
                %v1613 = vld [vmem:[%s1527 + $0x150] sm:$0xff]
                %1614 = vst [vmem:[%s1528 + $0x2a0] sm:$0xff] %v1613
                %v1615 = vld [vmem:[%s1527 + $0x158] sm:$0xff]
                %1616 = vst [vmem:[%s1528 + $0x2b0] sm:$0xff] %v1615
                %v1617 = vld [vmem:[%s1527 + $0x160] sm:$0xff]
                %1618 = vst [vmem:[%s1528 + $0x2c0] sm:$0xff] %v1617
                %v1619 = vld [vmem:[%s1527 + $0x168] sm:$0xff]
                %1620 = vst [vmem:[%s1528 + $0x2d0] sm:$0xff] %v1619
                %v1621 = vld [vmem:[%s1527 + $0x170] sm:$0xff]
                %1622 = vst [vmem:[%s1528 + $0x2e0] sm:$0xff] %v1621
                %v1623 = vld [vmem:[%s1527 + $0x178] sm:$0xff]
                %1624 = vst [vmem:[%s1528 + $0x2f0] sm:$0xff] %v1623
                %v1625 = vld [vmem:[%s1527 + $0x180] sm:$0xff]
                %1626 = vst [vmem:[%s1528 + $0x300] sm:$0xff] %v1625
                %v1627 = vld [vmem:[%s1527 + $0x188] sm:$0xff]
                %1628 = vst [vmem:[%s1528 + $0x310] sm:$0xff] %v1627
                %v1629 = vld [vmem:[%s1527 + $0x190] sm:$0xff]
                %1630 = vst [vmem:[%s1528 + $0x320] sm:$0xff] %v1629
                %v1631 = vld [vmem:[%s1527 + $0x198] sm:$0xff]
                %1632 = vst [vmem:[%s1528 + $0x330] sm:$0xff] %v1631
                %v1633 = vld [vmem:[%s1527 + $0x1a0] sm:$0xff]
                %1634 = vst [vmem:[%s1528 + $0x340] sm:$0xff] %v1633
                %v1635 = vld [vmem:[%s1527 + $0x1a8] sm:$0xff]
                %1636 = vst [vmem:[%s1528 + $0x350] sm:$0xff] %v1635
                %v1637 = vld [vmem:[%s1527 + $0x1b0] sm:$0xff]
                %1638 = vst [vmem:[%s1528 + $0x360] sm:$0xff] %v1637
                %v1639 = vld [vmem:[%s1527 + $0x1b8] sm:$0xff]
                %1640 = vst [vmem:[%s1528 + $0x370] sm:$0xff] %v1639
                %v1641 = vld [vmem:[%s1527 + $0x1c0] sm:$0xff]
                %1642 = vst [vmem:[%s1528 + $0x380] sm:$0xff] %v1641
                %v1643 = vld [vmem:[%s1527 + $0x1c8] sm:$0xff]
                %1644 = vst [vmem:[%s1528 + $0x390] sm:$0xff] %v1643
                %v1645 = vld [vmem:[%s1527 + $0x1d0] sm:$0xff]
                %1646 = vst [vmem:[%s1528 + $0x3a0] sm:$0xff] %v1645
                %v1647 = vld [vmem:[%s1527 + $0x1d8] sm:$0xff]
                %1648 = vst [vmem:[%s1528 + $0x3b0] sm:$0xff] %v1647
                %v1649 = vld [vmem:[%s1527 + $0x1e0] sm:$0xff]
                %1650 = vst [vmem:[%s1528 + $0x3c0] sm:$0xff] %v1649
                %v1651 = vld [vmem:[%s1527 + $0x1e8] sm:$0xff]
                %1652 = vst [vmem:[%s1528 + $0x3d0] sm:$0xff] %v1651
                %v1653 = vld [vmem:[%s1527 + $0x1f0] sm:$0xff]
                %1654 = vst [vmem:[%s1528 + $0x3e0] sm:$0xff] %v1653
                %v1655 = vld [vmem:[%s1527 + $0x1f8] sm:$0xff]
                %1656 = vst [vmem:[%s1528 + $0x3f0] sm:$0xff] %v1655
                %v1657 = vld [vmem:[%s1527 + $0x200] sm:$0xff]
                %1658 = vst [vmem:[%s1528 + $0x400] sm:$0xff] %v1657
                %v1659 = vld [vmem:[%s1527 + $0x208] sm:$0xff]
                %1660 = vst [vmem:[%s1528 + $0x410] sm:$0xff] %v1659
                %v1661 = vld [vmem:[%s1527 + $0x210] sm:$0xff]
                %1662 = vst [vmem:[%s1528 + $0x420] sm:$0xff] %v1661
                %v1663 = vld [vmem:[%s1527 + $0x218] sm:$0xff]
                %1664 = vst [vmem:[%s1528 + $0x430] sm:$0xff] %v1663
                %v1665 = vld [vmem:[%s1527 + $0x220] sm:$0xff]
                %1666 = vst [vmem:[%s1528 + $0x440] sm:$0xff] %v1665
                %v1667 = vld [vmem:[%s1527 + $0x228] sm:$0xff]
                %1668 = vst [vmem:[%s1528 + $0x450] sm:$0xff] %v1667
                %v1669 = vld [vmem:[%s1527 + $0x230] sm:$0xff]
                %1670 = vst [vmem:[%s1528 + $0x460] sm:$0xff] %v1669
                %v1671 = vld [vmem:[%s1527 + $0x238] sm:$0xff]
                %1672 = vst [vmem:[%s1528 + $0x470] sm:$0xff] %v1671
                %v1673 = vld [vmem:[%s1527 + $0x240] sm:$0xff]
                %1674 = vst [vmem:[%s1528 + $0x480] sm:$0xff] %v1673
                %v1675 = vld [vmem:[%s1527 + $0x248] sm:$0xff]
                %1676 = vst [vmem:[%s1528 + $0x490] sm:$0xff] %v1675
                %v1677 = vld [vmem:[%s1527 + $0x250] sm:$0xff]
                %1678 = vst [vmem:[%s1528 + $0x4a0] sm:$0xff] %v1677
                %v1679 = vld [vmem:[%s1527 + $0x258] sm:$0xff]
                %1680 = vst [vmem:[%s1528 + $0x4b0] sm:$0xff] %v1679
                %v1681 = vld [vmem:[%s1527 + $0x260] sm:$0xff]
                %1682 = vst [vmem:[%s1528 + $0x4c0] sm:$0xff] %v1681
                %v1683 = vld [vmem:[%s1527 + $0x268] sm:$0xff]
                %1684 = vst [vmem:[%s1528 + $0x4d0] sm:$0xff] %v1683
                %v1685 = vld [vmem:[%s1527 + $0x270] sm:$0xff]
                %1686 = vst [vmem:[%s1528 + $0x4e0] sm:$0xff] %v1685
                %v1687 = vld [vmem:[%s1527 + $0x278] sm:$0xff]
                %1688 = vst [vmem:[%s1528 + $0x4f0] sm:$0xff] %v1687
                %v1689 = vld [vmem:[%s1527 + $0x280] sm:$0xff]
                %1690 = vst [vmem:[%s1528 + $0x500] sm:$0xff] %v1689
                %v1691 = vld [vmem:[%s1527 + $0x288] sm:$0xff]
                %1692 = vst [vmem:[%s1528 + $0x510] sm:$0xff] %v1691
                %v1693 = vld [vmem:[%s1527 + $0x290] sm:$0xff]
                %1694 = vst [vmem:[%s1528 + $0x520] sm:$0xff] %v1693
                %v1695 = vld [vmem:[%s1527 + $0x298] sm:$0xff]
                %1696 = vst [vmem:[%s1528 + $0x530] sm:$0xff] %v1695
                %v1697 = vld [vmem:[%s1527 + $0x2a0] sm:$0xff]
                %1698 = vst [vmem:[%s1528 + $0x540] sm:$0xff] %v1697
                %v1699 = vld [vmem:[%s1527 + $0x2a8] sm:$0xff]
                %1700 = vst [vmem:[%s1528 + $0x550] sm:$0xff] %v1699
                %v1701 = vld [vmem:[%s1527 + $0x2b0] sm:$0xff]
                %1702 = vst [vmem:[%s1528 + $0x560] sm:$0xff] %v1701
                %v1703 = vld [vmem:[%s1527 + $0x2b8] sm:$0xff]
                %1704 = vst [vmem:[%s1528 + $0x570] sm:$0xff] %v1703
                %v1705 = vld [vmem:[%s1527 + $0x2c0] sm:$0xff]
                %1706 = vst [vmem:[%s1528 + $0x580] sm:$0xff] %v1705
                %v1707 = vld [vmem:[%s1527 + $0x2c8] sm:$0xff]
                %1708 = vst [vmem:[%s1528 + $0x590] sm:$0xff] %v1707
                %v1709 = vld [vmem:[%s1527 + $0x2d0] sm:$0xff]
                %1710 = vst [vmem:[%s1528 + $0x5a0] sm:$0xff] %v1709
                %v1711 = vld [vmem:[%s1527 + $0x2d8] sm:$0xff]
                %1712 = vst [vmem:[%s1528 + $0x5b0] sm:$0xff] %v1711
                %v1713 = vld [vmem:[%s1527 + $0x2e0] sm:$0xff]
                %1714 = vst [vmem:[%s1528 + $0x5c0] sm:$0xff] %v1713
                %v1715 = vld [vmem:[%s1527 + $0x2e8] sm:$0xff]
                %1716 = vst [vmem:[%s1528 + $0x5d0] sm:$0xff] %v1715
                %v1717 = vld [vmem:[%s1527 + $0x2f0] sm:$0xff]
                %1718 = vst [vmem:[%s1528 + $0x5e0] sm:$0xff] %v1717
                %v1719 = vld [vmem:[%s1527 + $0x2f8] sm:$0xff]
                %1720 = vst [vmem:[%s1528 + $0x5f0] sm:$0xff] %v1719
                %v1721 = vld [vmem:[%s1527 + $0x300] sm:$0xff]
                %1722 = vst [vmem:[%s1528 + $0x600] sm:$0xff] %v1721
                %v1723 = vld [vmem:[%s1527 + $0x308] sm:$0xff]
                %1724 = vst [vmem:[%s1528 + $0x610] sm:$0xff] %v1723
                %v1725 = vld [vmem:[%s1527 + $0x310] sm:$0xff]
                %1726 = vst [vmem:[%s1528 + $0x620] sm:$0xff] %v1725
                %v1727 = vld [vmem:[%s1527 + $0x318] sm:$0xff]
                %1728 = vst [vmem:[%s1528 + $0x630] sm:$0xff] %v1727
                %v1729 = vld [vmem:[%s1527 + $0x320] sm:$0xff]
                %1730 = vst [vmem:[%s1528 + $0x640] sm:$0xff] %v1729
                %v1731 = vld [vmem:[%s1527 + $0x328] sm:$0xff]
                %1732 = vst [vmem:[%s1528 + $0x650] sm:$0xff] %v1731
              $region129: #{embedding_forward.1} parent=123 // loop_footer
                %s1526 = sadd.s32 1, %s1522
              $region130: #{embedding_forward.1} parent=123 // loop_footer_branch
                %1521 = sbr.rel target = $region126
              $region131: #{embedding_forward.1} parent=123 // loop_exit
                _
            $region124: #{embedding_forward.1} parent=115 // pred_fallthru
              _
          $region116: #{embedding_forward.1} parent=111 // pred_fallthru
            _
          %1949 = vnop
        $region112: #{embedding_forward.1} parent=99 // pred_fallthru
          _
      $region100: #{embedding_forward.1} parent=5 // pred_fallthru
        _
      %p1950 = scmp.le.s32.totalorder 2, %s9
      // Predicated region
      $region147: #{embedding_forward.1} parent=5 // pred_check
        %p1951 = pneg %p1950
      $region148: #{embedding_forward.1} parent=5 // pred_check_branch
        %1953 = sbr.rel (%p1951) target = $region150
      $region149: #{embedding_forward.1} parent=5 // pred_region
        %s1954 = ssub.s32 %s9, 2
        // Predicated region
        $region151: #{embedding_forward.1} parent=149 // pred_check
          %p1955 = pneg %p132
        $region152: #{embedding_forward.1} parent=149 // pred_check_branch
          %1957 = sbr.rel (%p1955) target = $region154
        $region153: #{embedding_forward.1} parent=149 // pred_region
          %s1958 = sand.u32 %s117, 1
          %s1959 = sand.u32 %s117, 1
          %s1960 = smul.addr %s1959, 816
          %s1961 = scalar_lea.vmem [#allocation4], %s1960
        $region154: #{embedding_forward.1} parent=149 // pred_fallthru
          _
      $region150: #{embedding_forward.1} parent=5 // pred_fallthru
        _
    $region6: #{embedding_forward.1} parent=1 // loop_footer
      %s13 = sadd.s32 1, %s9
    $region7: #{embedding_forward.1} parent=1 // loop_footer_branch
      %8 = sbr.rel target = $region3
    $region8: #{embedding_forward.1} parent=1 // loop_exit
      _

</llo_original>
